<compile_context>
chip_gen: v5e
topology: v5e:2x2
jax: 0.10.0
libtpu: 0.0.40
codegen_flags: <defaults>
</compile_context>

<pallas_src>
import functools

import jax
import jax.numpy as jnp
from jax.experimental import pallas as pl
from jax.experimental.pallas import tpu as pltpu

_UNROLL = 8  # rows of gather DMAs issued per fori_loop iteration


def _round_up(x, m):
    return (x + m - 1) // m * m


def _pick_tile_s(S, cap=512):
    # Prefer the largest multiple-of-8 tile that divides S (no padding, no
    # trailing output slice); otherwise pad S up to a multiple of 8.
    best = 0
    t = 8
    cap = max(8, cap)
    while t <= min(cap, _round_up(S, 8)):
        if S % t == 0:
            best = t
        t += 8
    if best:
        return best
    return min(cap, _round_up(S, 8))


def bert_embedding_kernel(eps, n_types, tile_s, n_s_tiles, total_steps,
                          ids_ref,     # SMEM (B, S_pad) int32 [scalar prefetch]
                          tt_ref,      # VMEM (TILE_S, 1) f32
                          pos_ref,     # VMEM (S_pad, H)  (resident)
                          type_ref,    # VMEM (T, H)      (resident)
                          gamma_ref,   # VMEM (1, H)      (resident)
                          beta_ref,    # VMEM (1, H)      (resident)
                          word_hbm,    # HBM  (V, H)      (no auto-DMA)
                          out_ref,     # VMEM (TILE_S, H)
                          wbuf,        # VMEM (2, TILE_S, H) double buffer
                          sems):       # DMA semaphores (2,)
    b = pl.program_id(0)
    s = pl.program_id(1)
    g = b * n_s_tiles + s              # linear step index (last axis innermost)
    slot = jax.lax.rem(g, 2)

    def issue_gather(bb, ss, dst_slot):
        base = ss * tile_s

        def chunk(c, carry):
            r0 = c * _UNROLL
            for u in range(_UNROLL):           # static unroll of 8 rows
                r = r0 + u
                tok = ids_ref[bb, base + r]
                pltpu.make_async_copy(
                    word_hbm.at[pl.ds(tok, 1), :],
                    wbuf.at[dst_slot, pl.ds(r, 1), :],
                    sems.at[dst_slot]).start()
            return carry

        jax.lax.fori_loop(0, tile_s // _UNROLL, chunk, 0)

    # Prologue: the very first grid step gathers its own tile.
    @pl.when(g == 0)
    def _():
        issue_gather(b, s, slot)

    # Prefetch the NEXT tile's word-embedding rows into the other slot.
    @pl.when(g + 1 < total_steps)
    def _():
        nxt = s + 1
        wrap = nxt == n_s_tiles
        b_n = jnp.where(wrap, b + 1, b)
        s_n = jnp.where(wrap, 0, nxt)
        issue_gather(b_n, s_n, 1 - slot)

    # Position + token-type embeddings on the VPU while the DMAs fly.
    base = pl.multiple_of(s * tile_s, tile_s)
    pos_slab = pos_ref[pl.ds(base, tile_s), :].astype(jnp.float32)
    t0 = type_ref[pl.ds(0, 1), :].astype(jnp.float32)
    if n_types == 1:
        rest = pos_slab + t0
    elif n_types == 2:
        delta = type_ref[pl.ds(1, 1), :].astype(jnp.float32) - t0
        rest = pos_slab + t0 + tt_ref[...] * delta
    else:
        tt = tt_ref[...]
        rest = pos_slab
        for t in range(n_types):
            rest = rest + jnp.where(tt == float(t), 1.0, 0.0) * \
                type_ref[pl.ds(t, 1), :].astype(jnp.float32)

    # Single bulk wait for all TILE_S gathered rows of the current slot
    # (descriptor byte count == sum of the issued per-row copies).
    pltpu.make_async_copy(word_hbm.at[pl.ds(0, tile_s), :],
                          wbuf.at[slot],
                          sems.at[slot]).wait()

    emb = wbuf[slot].astype(jnp.float32) + rest

    # LayerNorm over hidden dim: two-pass statistics, biased variance
    # (matches torch.nn.LayerNorm).
    mean = jnp.mean(emb, axis=-1, keepdims=True)
    centered = emb - mean
    var = jnp.mean(centered * centered, axis=-1, keepdims=True)
    inv_std = jax.lax.rsqrt(var + eps)
    out = centered * inv_std * gamma_ref[...].astype(jnp.float32) \
        + beta_ref[...].astype(jnp.float32)

    # Dropout: identity (inference mode).
    out_ref[...] = out.astype(out_ref.dtype)


def bert_embedding(x_ids, token_type_ids, word_table, pos_table, type_table,
                   gamma, beta, *, eps=1e-5, tile_s=None):
    B, S = x_ids.shape
    V, H = word_table.shape
    T = type_table.shape[0]
    assert pos_table.shape[0] >= S, "sequence longer than max_len"

    if token_type_ids is None:
        # Module's buffered zero token_type_ids path.
        token_type_ids = jnp.zeros((B, S), dtype=jnp.int32)

    if tile_s is None:
        tile_s = _pick_tile_s(S)
    tile_s = max(8, _round_up(int(tile_s), 8))
    tile_s = min(tile_s, _round_up(S, 8))
    assert V >= tile_s, "vocab size must be >= tile_s (bulk-wait descriptor)"

    s_pad = _round_up(S, tile_s)
    n_s_tiles = s_pad // tile_s
    pad = s_pad - S
    total_steps = B * n_s_tiles

    ids = x_ids.astype(jnp.int32)
    tts = token_type_ids.astype(jnp.float32)
    pos_slice = pos_table[:S, :]
    if pad:
        ids = jnp.pad(ids, ((0, 0), (0, pad)))
        tts = jnp.pad(tts, ((0, 0), (0, pad)))
        pos_slice = jnp.pad(pos_slice, ((0, pad), (0, 0)))
    tts_flat = tts.reshape(B * s_pad, 1)

    kernel = functools.partial(
        bert_embedding_kernel, float(eps), int(T), int(tile_s),
        int(n_s_tiles), int(total_steps))

    grid_spec = pltpu.PrefetchScalarGridSpec(
        num_scalar_prefetch=1,                    # token ids -> SMEM
        grid=(B, n_s_tiles),
        in_specs=[
            # token-type value as float, one (TILE_S, 1) block per tile
            pl.BlockSpec((tile_s, 1),
                         lambda b, s, _ids: (b * n_s_tiles + s, 0)),
            # position embedding: fully VMEM resident (constant block index)
            pl.BlockSpec((s_pad, H), lambda b, s, _ids: (0, 0)),
            # small resident blocks
            pl.BlockSpec((T, H), lambda b, s, _ids: (0, 0)),
            pl.BlockSpec((1, H), lambda b, s, _ids: (0, 0)),
            pl.BlockSpec((1, H), lambda b, s, _ids: (0, 0)),
            # word table stays in HBM; rows are DMA-gathered in-kernel
            pl.BlockSpec(memory_space=pl.ANY),
        ],
        out_specs=pl.BlockSpec((tile_s, H),
                               lambda b, s, _ids: (b * n_s_tiles + s, 0)),
        scratch_shapes=[
            pltpu.VMEM((2, tile_s, H), word_table.dtype),
            pltpu.SemaphoreType.DMA((2,)),
        ],
    )

    itm = jnp.dtype(word_table.dtype).itemsize
    vmem_bytes = (2 * s_pad * H * 4          # resident pos (2 auto-buffers)
                  + 2 * tile_s * H * 4       # out blocks (double-buffered)
                  + 2 * tile_s * H * itm     # wbuf scratch
                  + 8 * tile_s               # tt blocks
                  + 4 * (T + 2) * H * 4      # type/gamma/beta
                  + (2 << 20))               # headroom
    vmem_limit = int(min(64 << 20, max(vmem_bytes, 16 << 20)))

    n_pad = B * s_pad
    out_flat = pl.pallas_call(
        kernel,
        out_shape=jax.ShapeDtypeStruct((n_pad, H), jnp.float32),
        grid_spec=grid_spec,
        compiler_params=pltpu.CompilerParams(
            # "arbitrary": the gather is manually software-pipelined across
            # grid steps, which requires sequential step ordering.
            dimension_semantics=("arbitrary", "arbitrary"),
            vmem_limit_bytes=vmem_limit),
        cost_estimate=pl.CostEstimate(
            flops=int(10 * n_pad * H),
            transcendentals=int(n_pad),
            bytes_accessed=int((2 * n_pad * H + s_pad * H) * 4)),
    )(ids, tts_flat, pos_slice, type_table,
      gamma.reshape(1, H), beta.reshape(1, H), word_table)

    out = out_flat.reshape(B, s_pad, H)
    if pad:
        out = out[:, :S, :]
    return out


def make_params(key, hidden_size, vocab_size, padding_id, max_len,
                type_vocab_size):
    k1, k2, k3 = jax.random.split(key, 3)
    word = jax.random.normal(k1, (vocab_size, hidden_size), jnp.float32)
    # nn.Embedding(padding_idx=...) zeroes that row at init.
    word = word.at[padding_id].set(0.0)
    pos = jax.random.normal(k2, (max_len, hidden_size), jnp.float32)
    ttype = jax.random.normal(k3, (type_vocab_size, hidden_size), jnp.float32)
    gamma = jnp.ones((hidden_size,), jnp.float32)
    beta = jnp.zeros((hidden_size,), jnp.float32)
    return word, pos, ttype, gamma, beta


if __name__ == "__main__":
    # Small shapes consistent with the module's forward (H kept lane-dense).
    B, S = 2, 16
    hidden_size = 128
    vocab_size = 512
    padding_id = 0
    max_len = 64
    type_vocab_size = 2
    eps = 1e-5

    key = jax.random.PRNGKey(0)
    kp, kx, kt = jax.random.split(key, 3)
    word_table, pos_table, type_table, gamma, beta = make_params(
        kp, hidden_size, vocab_size, padding_id, max_len, type_vocab_size)

    x_ids = jax.random.randint(kx, (B, S), 0, vocab_size, dtype=jnp.int32)
    token_type_ids = jax.random.randint(kt, (B, S), 0, type_vocab_size,
                                        dtype=jnp.int32)

    def reference(ids, tts):
        emb = word_table[ids] + pos_table[None, :S, :] + type_table[tts]
        mean = emb.mean(-1, keepdims=True)
        var = ((emb - mean) ** 2).mean(-1, keepdims=True)
        return (emb - mean) / jnp.sqrt(var + eps) * gamma + beta

    out = bert_embedding(x_ids, token_type_ids, word_table, pos_table,
                         type_table, gamma, beta, eps=eps)
    jax.block_until_ready(out)
    assert out.shape == (B, S, hidden_size)
    assert jnp.allclose(out, reference(x_ids, token_type_ids),
                        atol=1e-4, rtol=1e-4)

    # token_type_ids=None path (module's buffered zeros).
    out0 = bert_embedding(x_ids, None, word_table, pos_table, type_table,
                          gamma, beta, eps=eps)
    jax.block_until_ready(out0)
    assert jnp.allclose(out0, reference(x_ids, jnp.zeros((B, S), jnp.int32)),
                        atol=1e-4, rtol=1e-4)

    print("KERNEL_OK")
</pallas_src>

<mosaic_0001>
module attributes {stable_mosaic.version = 11 : i64} {
  func.func @bert_embedding_kernel(%arg0: i32, %arg1: i32, %arg2: memref<2x16xi32, #tpu.memory_space<smem>>, %arg3: memref<16x1xf32, #tpu.memory_space<vmem>>, %arg4: memref<16x128xf32, #tpu.memory_space<vmem>>, %arg5: memref<2x128xf32, #tpu.memory_space<vmem>>, %arg6: memref<1x128xf32, #tpu.memory_space<vmem>>, %arg7: memref<1x128xf32, #tpu.memory_space<vmem>>, %arg8: memref<512x128xf32, #tpu.memory_space<any>>, %arg9: memref<16x128xf32, #tpu.memory_space<vmem>>, %arg10: memref<2x16x128xf32, #tpu.memory_space<vmem>>, %arg11: memref<2x!tpu.dma_semaphore, #tpu.memory_space<semaphore_mem>>) attributes {dimension_semantics = [#tpu.dimension_semantics<arbitrary>, #tpu.dimension_semantics<arbitrary>], iteration_bounds = array<i64: 2, 1>, scalar_prefetch = 1 : i64, scratch_operands = 2 : i64, tpu.core_type = #tpu.core_type<tc>, window_params = [{transform_indices = @transform_0, window_bounds = array<i64: 16, 1>}, {pipeline_mode = #tpu.pipeline_mode<synchronous>, transform_indices = @transform_1, window_bounds = array<i64: 16, 128>}, {pipeline_mode = #tpu.pipeline_mode<synchronous>, transform_indices = @transform_2, window_bounds = array<i64: 2, 128>}, {pipeline_mode = #tpu.pipeline_mode<synchronous>, transform_indices = @transform_3, window_bounds = array<i64: 1, 128>}, {pipeline_mode = #tpu.pipeline_mode<synchronous>, transform_indices = @transform_4, window_bounds = array<i64: 1, 128>}, {}, {transform_indices = @transform_6, window_bounds = array<i64: 16, 128>}]} {
    %c1_i32 = arith.constant 1 : i32
    %0 = arith.muli %arg0, %c1_i32 : i32
    %1 = arith.addi %0, %arg1 : i32
    %c2_i32 = arith.constant 2 : i32
    %2 = arith.remsi %1, %c2_i32 : i32
    %c0_i32 = arith.constant 0 : i32
    %3 = arith.cmpi eq, %1, %c0_i32 : i32
    %4 = arith.extui %3 : i1 to i32
    %c0_i32_0 = arith.constant 0 : i32
    %5 = arith.cmpi ne, %4, %c0_i32_0 : i32
    scf.if %5 {
      %c16_i32_25 = arith.constant 16 : i32
      %56 = arith.muli %arg1, %c16_i32_25 : i32
      %c0_i32_26 = arith.constant 0 : i32
      %c2_i32_27 = arith.constant 2 : i32
      %57 = arith.addi %c0_i32_26, %c2_i32_27 : i32
      %c1_i32_28 = arith.constant 1 : i32
      scf.for %arg12 = %c0_i32_26 to %57 step %c1_i32_28  : i32 {
        %c8_i32 = arith.constant 8 : i32
        %58 = arith.muli %arg12, %c8_i32 : i32
        %c0_i32_30 = arith.constant 0 : i32
        %59 = arith.addi %58, %c0_i32_30 : i32
        %60 = arith.addi %56, %59 : i32
        %61 = arith.index_cast %arg0 : i32 to index
        %62 = arith.index_cast %60 : i32 to index
        %63 = memref.load %arg2[%61, %62] : memref<2x16xi32, #tpu.memory_space<smem>>
        %c0_i32_31 = arith.constant 0 : i32
        %64 = tpu.memref_slice %arg8[%63, %c0_i32_31] : memref<512x128xf32, #tpu.memory_space<any>> -> memref<1x128xf32, #tpu.memory_space<any>>
        %c0_i32_32 = arith.constant 0 : i32
        %65 = tpu.memref_slice %arg10[%2, %59, %c0_i32_32] : memref<2x16x128xf32, #tpu.memory_space<vmem>> -> memref<1x1x128xf32, #tpu.memory_space<vmem>>
        %66 = tpu.memref_squeeze %65 : memref<1x1x128xf32, #tpu.memory_space<vmem>> -> memref<1x128xf32, #tpu.memory_space<vmem>>
        %67 = tpu.memref_slice %arg11[%2] : memref<2x!tpu.dma_semaphore, #tpu.memory_space<semaphore_mem>> -> memref<1x!tpu.dma_semaphore, #tpu.memory_space<semaphore_mem>>
        %68 = tpu.memref_squeeze %67 : memref<1x!tpu.dma_semaphore, #tpu.memory_space<semaphore_mem>> -> memref<!tpu.dma_semaphore, #tpu.memory_space<semaphore_mem>>
        tpu.enqueue_dma source(%64 : memref<1x128xf32, #tpu.memory_space<any>>) target(%66 : memref<1x128xf32, #tpu.memory_space<vmem>>) target_semaphore(%68 : memref<!tpu.dma_semaphore, #tpu.memory_space<semaphore_mem>>)
        %c1_i32_33 = arith.constant 1 : i32
        %69 = arith.addi %58, %c1_i32_33 : i32
        %70 = arith.addi %56, %69 : i32
        %71 = arith.index_cast %arg0 : i32 to index
        %72 = arith.index_cast %70 : i32 to index
        %73 = memref.load %arg2[%71, %72] : memref<2x16xi32, #tpu.memory_space<smem>>
        %c0_i32_34 = arith.constant 0 : i32
        %74 = tpu.memref_slice %arg8[%73, %c0_i32_34] : memref<512x128xf32, #tpu.memory_space<any>> -> memref<1x128xf32, #tpu.memory_space<any>>
        %c0_i32_35 = arith.constant 0 : i32
        %75 = tpu.memref_slice %arg10[%2, %69, %c0_i32_35] : memref<2x16x128xf32, #tpu.memory_space<vmem>> -> memref<1x1x128xf32, #tpu.memory_space<vmem>>
        %76 = tpu.memref_squeeze %75 : memref<1x1x128xf32, #tpu.memory_space<vmem>> -> memref<1x128xf32, #tpu.memory_space<vmem>>
        %77 = tpu.memref_slice %arg11[%2] : memref<2x!tpu.dma_semaphore, #tpu.memory_space<semaphore_mem>> -> memref<1x!tpu.dma_semaphore, #tpu.memory_space<semaphore_mem>>
        %78 = tpu.memref_squeeze %77 : memref<1x!tpu.dma_semaphore, #tpu.memory_space<semaphore_mem>> -> memref<!tpu.dma_semaphore, #tpu.memory_space<semaphore_mem>>
        tpu.enqueue_dma source(%74 : memref<1x128xf32, #tpu.memory_space<any>>) target(%76 : memref<1x128xf32, #tpu.memory_space<vmem>>) target_semaphore(%78 : memref<!tpu.dma_semaphore, #tpu.memory_space<semaphore_mem>>)
        %c2_i32_36 = arith.constant 2 : i32
        %79 = arith.addi %58, %c2_i32_36 : i32
        %80 = arith.addi %56, %79 : i32
        %81 = arith.index_cast %arg0 : i32 to index
        %82 = arith.index_cast %80 : i32 to index
        %83 = memref.load %arg2[%81, %82] : memref<2x16xi32, #tpu.memory_space<smem>>
        %c0_i32_37 = arith.constant 0 : i32
        %84 = tpu.memref_slice %arg8[%83, %c0_i32_37] : memref<512x128xf32, #tpu.memory_space<any>> -> memref<1x128xf32, #tpu.memory_space<any>>
        %c0_i32_38 = arith.constant 0 : i32
        %85 = tpu.memref_slice %arg10[%2, %79, %c0_i32_38] : memref<2x16x128xf32, #tpu.memory_space<vmem>> -> memref<1x1x128xf32, #tpu.memory_space<vmem>>
        %86 = tpu.memref_squeeze %85 : memref<1x1x128xf32, #tpu.memory_space<vmem>> -> memref<1x128xf32, #tpu.memory_space<vmem>>
        %87 = tpu.memref_slice %arg11[%2] : memref<2x!tpu.dma_semaphore, #tpu.memory_space<semaphore_mem>> -> memref<1x!tpu.dma_semaphore, #tpu.memory_space<semaphore_mem>>
        %88 = tpu.memref_squeeze %87 : memref<1x!tpu.dma_semaphore, #tpu.memory_space<semaphore_mem>> -> memref<!tpu.dma_semaphore, #tpu.memory_space<semaphore_mem>>
        tpu.enqueue_dma source(%84 : memref<1x128xf32, #tpu.memory_space<any>>) target(%86 : memref<1x128xf32, #tpu.memory_space<vmem>>) target_semaphore(%88 : memref<!tpu.dma_semaphore, #tpu.memory_space<semaphore_mem>>)
        %c3_i32 = arith.constant 3 : i32
        %89 = arith.addi %58, %c3_i32 : i32
        %90 = arith.addi %56, %89 : i32
        %91 = arith.index_cast %arg0 : i32 to index
        %92 = arith.index_cast %90 : i32 to index
        %93 = memref.load %arg2[%91, %92] : memref<2x16xi32, #tpu.memory_space<smem>>
        %c0_i32_39 = arith.constant 0 : i32
        %94 = tpu.memref_slice %arg8[%93, %c0_i32_39] : memref<512x128xf32, #tpu.memory_space<any>> -> memref<1x128xf32, #tpu.memory_space<any>>
        %c0_i32_40 = arith.constant 0 : i32
        %95 = tpu.memref_slice %arg10[%2, %89, %c0_i32_40] : memref<2x16x128xf32, #tpu.memory_space<vmem>> -> memref<1x1x128xf32, #tpu.memory_space<vmem>>
        %96 = tpu.memref_squeeze %95 : memref<1x1x128xf32, #tpu.memory_space<vmem>> -> memref<1x128xf32, #tpu.memory_space<vmem>>
        %97 = tpu.memref_slice %arg11[%2] : memref<2x!tpu.dma_semaphore, #tpu.memory_space<semaphore_mem>> -> memref<1x!tpu.dma_semaphore, #tpu.memory_space<semaphore_mem>>
        %98 = tpu.memref_squeeze %97 : memref<1x!tpu.dma_semaphore, #tpu.memory_space<semaphore_mem>> -> memref<!tpu.dma_semaphore, #tpu.memory_space<semaphore_mem>>
        tpu.enqueue_dma source(%94 : memref<1x128xf32, #tpu.memory_space<any>>) target(%96 : memref<1x128xf32, #tpu.memory_space<vmem>>) target_semaphore(%98 : memref<!tpu.dma_semaphore, #tpu.memory_space<semaphore_mem>>)
        %c4_i32 = arith.constant 4 : i32
        %99 = arith.addi %58, %c4_i32 : i32
        %100 = arith.addi %56, %99 : i32
        %101 = arith.index_cast %arg0 : i32 to index
        %102 = arith.index_cast %100 : i32 to index
        %103 = memref.load %arg2[%101, %102] : memref<2x16xi32, #tpu.memory_space<smem>>
        %c0_i32_41 = arith.constant 0 : i32
        %104 = tpu.memref_slice %arg8[%103, %c0_i32_41] : memref<512x128xf32, #tpu.memory_space<any>> -> memref<1x128xf32, #tpu.memory_space<any>>
        %c0_i32_42 = arith.constant 0 : i32
        %105 = tpu.memref_slice %arg10[%2, %99, %c0_i32_42] : memref<2x16x128xf32, #tpu.memory_space<vmem>> -> memref<1x1x128xf32, #tpu.memory_space<vmem>>
        %106 = tpu.memref_squeeze %105 : memref<1x1x128xf32, #tpu.memory_space<vmem>> -> memref<1x128xf32, #tpu.memory_space<vmem>>
        %107 = tpu.memref_slice %arg11[%2] : memref<2x!tpu.dma_semaphore, #tpu.memory_space<semaphore_mem>> -> memref<1x!tpu.dma_semaphore, #tpu.memory_space<semaphore_mem>>
        %108 = tpu.memref_squeeze %107 : memref<1x!tpu.dma_semaphore, #tpu.memory_space<semaphore_mem>> -> memref<!tpu.dma_semaphore, #tpu.memory_space<semaphore_mem>>
        tpu.enqueue_dma source(%104 : memref<1x128xf32, #tpu.memory_space<any>>) target(%106 : memref<1x128xf32, #tpu.memory_space<vmem>>) target_semaphore(%108 : memref<!tpu.dma_semaphore, #tpu.memory_space<semaphore_mem>>)
        %c5_i32 = arith.constant 5 : i32
        %109 = arith.addi %58, %c5_i32 : i32
        %110 = arith.addi %56, %109 : i32
        %111 = arith.index_cast %arg0 : i32 to index
        %112 = arith.index_cast %110 : i32 to index
        %113 = memref.load %arg2[%111, %112] : memref<2x16xi32, #tpu.memory_space<smem>>
        %c0_i32_43 = arith.constant 0 : i32
        %114 = tpu.memref_slice %arg8[%113, %c0_i32_43] : memref<512x128xf32, #tpu.memory_space<any>> -> memref<1x128xf32, #tpu.memory_space<any>>
        %c0_i32_44 = arith.constant 0 : i32
        %115 = tpu.memref_slice %arg10[%2, %109, %c0_i32_44] : memref<2x16x128xf32, #tpu.memory_space<vmem>> -> memref<1x1x128xf32, #tpu.memory_space<vmem>>
        %116 = tpu.memref_squeeze %115 : memref<1x1x128xf32, #tpu.memory_space<vmem>> -> memref<1x128xf32, #tpu.memory_space<vmem>>
        %117 = tpu.memref_slice %arg11[%2] : memref<2x!tpu.dma_semaphore, #tpu.memory_space<semaphore_mem>> -> memref<1x!tpu.dma_semaphore, #tpu.memory_space<semaphore_mem>>
        %118 = tpu.memref_squeeze %117 : memref<1x!tpu.dma_semaphore, #tpu.memory_space<semaphore_mem>> -> memref<!tpu.dma_semaphore, #tpu.memory_space<semaphore_mem>>
        tpu.enqueue_dma source(%114 : memref<1x128xf32, #tpu.memory_space<any>>) target(%116 : memref<1x128xf32, #tpu.memory_space<vmem>>) target_semaphore(%118 : memref<!tpu.dma_semaphore, #tpu.memory_space<semaphore_mem>>)
        %c6_i32 = arith.constant 6 : i32
        %119 = arith.addi %58, %c6_i32 : i32
        %120 = arith.addi %56, %119 : i32
        %121 = arith.index_cast %arg0 : i32 to index
        %122 = arith.index_cast %120 : i32 to index
        %123 = memref.load %arg2[%121, %122] : memref<2x16xi32, #tpu.memory_space<smem>>
        %c0_i32_45 = arith.constant 0 : i32
        %124 = tpu.memref_slice %arg8[%123, %c0_i32_45] : memref<512x128xf32, #tpu.memory_space<any>> -> memref<1x128xf32, #tpu.memory_space<any>>
        %c0_i32_46 = arith.constant 0 : i32
        %125 = tpu.memref_slice %arg10[%2, %119, %c0_i32_46] : memref<2x16x128xf32, #tpu.memory_space<vmem>> -> memref<1x1x128xf32, #tpu.memory_space<vmem>>
        %126 = tpu.memref_squeeze %125 : memref<1x1x128xf32, #tpu.memory_space<vmem>> -> memref<1x128xf32, #tpu.memory_space<vmem>>
        %127 = tpu.memref_slice %arg11[%2] : memref<2x!tpu.dma_semaphore, #tpu.memory_space<semaphore_mem>> -> memref<1x!tpu.dma_semaphore, #tpu.memory_space<semaphore_mem>>
        %128 = tpu.memref_squeeze %127 : memref<1x!tpu.dma_semaphore, #tpu.memory_space<semaphore_mem>> -> memref<!tpu.dma_semaphore, #tpu.memory_space<semaphore_mem>>
        tpu.enqueue_dma source(%124 : memref<1x128xf32, #tpu.memory_space<any>>) target(%126 : memref<1x128xf32, #tpu.memory_space<vmem>>) target_semaphore(%128 : memref<!tpu.dma_semaphore, #tpu.memory_space<semaphore_mem>>)
        %c7_i32 = arith.constant 7 : i32
        %129 = arith.addi %58, %c7_i32 : i32
        %130 = arith.addi %56, %129 : i32
        %131 = arith.index_cast %arg0 : i32 to index
        %132 = arith.index_cast %130 : i32 to index
        %133 = memref.load %arg2[%131, %132] : memref<2x16xi32, #tpu.memory_space<smem>>
        %c0_i32_47 = arith.constant 0 : i32
        %134 = tpu.memref_slice %arg8[%133, %c0_i32_47] : memref<512x128xf32, #tpu.memory_space<any>> -> memref<1x128xf32, #tpu.memory_space<any>>
        %c0_i32_48 = arith.constant 0 : i32
        %135 = tpu.memref_slice %arg10[%2, %129, %c0_i32_48] : memref<2x16x128xf32, #tpu.memory_space<vmem>> -> memref<1x1x128xf32, #tpu.memory_space<vmem>>
        %136 = tpu.memref_squeeze %135 : memref<1x1x128xf32, #tpu.memory_space<vmem>> -> memref<1x128xf32, #tpu.memory_space<vmem>>
        %137 = tpu.memref_slice %arg11[%2] : memref<2x!tpu.dma_semaphore, #tpu.memory_space<semaphore_mem>> -> memref<1x!tpu.dma_semaphore, #tpu.memory_space<semaphore_mem>>
        %138 = tpu.memref_squeeze %137 : memref<1x!tpu.dma_semaphore, #tpu.memory_space<semaphore_mem>> -> memref<!tpu.dma_semaphore, #tpu.memory_space<semaphore_mem>>
        tpu.enqueue_dma source(%134 : memref<1x128xf32, #tpu.memory_space<any>>) target(%136 : memref<1x128xf32, #tpu.memory_space<vmem>>) target_semaphore(%138 : memref<!tpu.dma_semaphore, #tpu.memory_space<semaphore_mem>>)
      }
      %c2_i32_29 = arith.constant 2 : i32
    } else {
    }
    %c1_i32_1 = arith.constant 1 : i32
    %6 = arith.addi %1, %c1_i32_1 : i32
    %c2_i32_2 = arith.constant 2 : i32
    %7 = arith.cmpi slt, %6, %c2_i32_2 : i32
    %8 = arith.extui %7 : i1 to i32
    %c0_i32_3 = arith.constant 0 : i32
    %9 = arith.cmpi ne, %8, %c0_i32_3 : i32
    scf.if %9 {
      %c1_i32_25 = arith.constant 1 : i32
      %56 = arith.addi %arg1, %c1_i32_25 : i32
      %c1_i32_26 = arith.constant 1 : i32
      %57 = arith.cmpi eq, %56, %c1_i32_26 : i32
      %c1_i32_27 = arith.constant 1 : i32
      %58 = arith.addi %arg0, %c1_i32_27 : i32
      %59 = arith.select %57, %58, %arg0 : i32
      %c0_i32_28 = arith.constant 0 : i32
      %60 = arith.select %57, %c0_i32_28, %56 : i32
      %c1_i32_29 = arith.constant 1 : i32
      %61 = arith.subi %c1_i32_29, %2 : i32
      %c16_i32_30 = arith.constant 16 : i32
      %62 = arith.muli %60, %c16_i32_30 : i32
      %c0_i32_31 = arith.constant 0 : i32
      %c2_i32_32 = arith.constant 2 : i32
      %63 = arith.addi %c0_i32_31, %c2_i32_32 : i32
      %c1_i32_33 = arith.constant 1 : i32
      scf.for %arg12 = %c0_i32_31 to %63 step %c1_i32_33  : i32 {
        %c8_i32 = arith.constant 8 : i32
        %64 = arith.muli %arg12, %c8_i32 : i32
        %c0_i32_35 = arith.constant 0 : i32
        %65 = arith.addi %64, %c0_i32_35 : i32
        %66 = arith.addi %62, %65 : i32
        %67 = arith.index_cast %59 : i32 to index
        %68 = arith.index_cast %66 : i32 to index
        %69 = memref.load %arg2[%67, %68] : memref<2x16xi32, #tpu.memory_space<smem>>
        %c0_i32_36 = arith.constant 0 : i32
        %70 = tpu.memref_slice %arg8[%69, %c0_i32_36] : memref<512x128xf32, #tpu.memory_space<any>> -> memref<1x128xf32, #tpu.memory_space<any>>
        %c0_i32_37 = arith.constant 0 : i32
        %71 = tpu.memref_slice %arg10[%61, %65, %c0_i32_37] : memref<2x16x128xf32, #tpu.memory_space<vmem>> -> memref<1x1x128xf32, #tpu.memory_space<vmem>>
        %72 = tpu.memref_squeeze %71 : memref<1x1x128xf32, #tpu.memory_space<vmem>> -> memref<1x128xf32, #tpu.memory_space<vmem>>
        %73 = tpu.memref_slice %arg11[%61] : memref<2x!tpu.dma_semaphore, #tpu.memory_space<semaphore_mem>> -> memref<1x!tpu.dma_semaphore, #tpu.memory_space<semaphore_mem>>
        %74 = tpu.memref_squeeze %73 : memref<1x!tpu.dma_semaphore, #tpu.memory_space<semaphore_mem>> -> memref<!tpu.dma_semaphore, #tpu.memory_space<semaphore_mem>>
        tpu.enqueue_dma source(%70 : memref<1x128xf32, #tpu.memory_space<any>>) target(%72 : memref<1x128xf32, #tpu.memory_space<vmem>>) target_semaphore(%74 : memref<!tpu.dma_semaphore, #tpu.memory_space<semaphore_mem>>)
        %c1_i32_38 = arith.constant 1 : i32
        %75 = arith.addi %64, %c1_i32_38 : i32
        %76 = arith.addi %62, %75 : i32
        %77 = arith.index_cast %59 : i32 to index
        %78 = arith.index_cast %76 : i32 to index
        %79 = memref.load %arg2[%77, %78] : memref<2x16xi32, #tpu.memory_space<smem>>
        %c0_i32_39 = arith.constant 0 : i32
        %80 = tpu.memref_slice %arg8[%79, %c0_i32_39] : memref<512x128xf32, #tpu.memory_space<any>> -> memref<1x128xf32, #tpu.memory_space<any>>
        %c0_i32_40 = arith.constant 0 : i32
        %81 = tpu.memref_slice %arg10[%61, %75, %c0_i32_40] : memref<2x16x128xf32, #tpu.memory_space<vmem>> -> memref<1x1x128xf32, #tpu.memory_space<vmem>>
        %82 = tpu.memref_squeeze %81 : memref<1x1x128xf32, #tpu.memory_space<vmem>> -> memref<1x128xf32, #tpu.memory_space<vmem>>
        %83 = tpu.memref_slice %arg11[%61] : memref<2x!tpu.dma_semaphore, #tpu.memory_space<semaphore_mem>> -> memref<1x!tpu.dma_semaphore, #tpu.memory_space<semaphore_mem>>
        %84 = tpu.memref_squeeze %83 : memref<1x!tpu.dma_semaphore, #tpu.memory_space<semaphore_mem>> -> memref<!tpu.dma_semaphore, #tpu.memory_space<semaphore_mem>>
        tpu.enqueue_dma source(%80 : memref<1x128xf32, #tpu.memory_space<any>>) target(%82 : memref<1x128xf32, #tpu.memory_space<vmem>>) target_semaphore(%84 : memref<!tpu.dma_semaphore, #tpu.memory_space<semaphore_mem>>)
        %c2_i32_41 = arith.constant 2 : i32
        %85 = arith.addi %64, %c2_i32_41 : i32
        %86 = arith.addi %62, %85 : i32
        %87 = arith.index_cast %59 : i32 to index
        %88 = arith.index_cast %86 : i32 to index
        %89 = memref.load %arg2[%87, %88] : memref<2x16xi32, #tpu.memory_space<smem>>
        %c0_i32_42 = arith.constant 0 : i32
        %90 = tpu.memref_slice %arg8[%89, %c0_i32_42] : memref<512x128xf32, #tpu.memory_space<any>> -> memref<1x128xf32, #tpu.memory_space<any>>
        %c0_i32_43 = arith.constant 0 : i32
        %91 = tpu.memref_slice %arg10[%61, %85, %c0_i32_43] : memref<2x16x128xf32, #tpu.memory_space<vmem>> -> memref<1x1x128xf32, #tpu.memory_space<vmem>>
        %92 = tpu.memref_squeeze %91 : memref<1x1x128xf32, #tpu.memory_space<vmem>> -> memref<1x128xf32, #tpu.memory_space<vmem>>
        %93 = tpu.memref_slice %arg11[%61] : memref<2x!tpu.dma_semaphore, #tpu.memory_space<semaphore_mem>> -> memref<1x!tpu.dma_semaphore, #tpu.memory_space<semaphore_mem>>
        %94 = tpu.memref_squeeze %93 : memref<1x!tpu.dma_semaphore, #tpu.memory_space<semaphore_mem>> -> memref<!tpu.dma_semaphore, #tpu.memory_space<semaphore_mem>>
        tpu.enqueue_dma source(%90 : memref<1x128xf32, #tpu.memory_space<any>>) target(%92 : memref<1x128xf32, #tpu.memory_space<vmem>>) target_semaphore(%94 : memref<!tpu.dma_semaphore, #tpu.memory_space<semaphore_mem>>)
        %c3_i32 = arith.constant 3 : i32
        %95 = arith.addi %64, %c3_i32 : i32
        %96 = arith.addi %62, %95 : i32
        %97 = arith.index_cast %59 : i32 to index
        %98 = arith.index_cast %96 : i32 to index
        %99 = memref.load %arg2[%97, %98] : memref<2x16xi32, #tpu.memory_space<smem>>
        %c0_i32_44 = arith.constant 0 : i32
        %100 = tpu.memref_slice %arg8[%99, %c0_i32_44] : memref<512x128xf32, #tpu.memory_space<any>> -> memref<1x128xf32, #tpu.memory_space<any>>
        %c0_i32_45 = arith.constant 0 : i32
        %101 = tpu.memref_slice %arg10[%61, %95, %c0_i32_45] : memref<2x16x128xf32, #tpu.memory_space<vmem>> -> memref<1x1x128xf32, #tpu.memory_space<vmem>>
        %102 = tpu.memref_squeeze %101 : memref<1x1x128xf32, #tpu.memory_space<vmem>> -> memref<1x128xf32, #tpu.memory_space<vmem>>
        %103 = tpu.memref_slice %arg11[%61] : memref<2x!tpu.dma_semaphore, #tpu.memory_space<semaphore_mem>> -> memref<1x!tpu.dma_semaphore, #tpu.memory_space<semaphore_mem>>
        %104 = tpu.memref_squeeze %103 : memref<1x!tpu.dma_semaphore, #tpu.memory_space<semaphore_mem>> -> memref<!tpu.dma_semaphore, #tpu.memory_space<semaphore_mem>>
        tpu.enqueue_dma source(%100 : memref<1x128xf32, #tpu.memory_space<any>>) target(%102 : memref<1x128xf32, #tpu.memory_space<vmem>>) target_semaphore(%104 : memref<!tpu.dma_semaphore, #tpu.memory_space<semaphore_mem>>)
        %c4_i32 = arith.constant 4 : i32
        %105 = arith.addi %64, %c4_i32 : i32
        %106 = arith.addi %62, %105 : i32
        %107 = arith.index_cast %59 : i32 to index
        %108 = arith.index_cast %106 : i32 to index
        %109 = memref.load %arg2[%107, %108] : memref<2x16xi32, #tpu.memory_space<smem>>
        %c0_i32_46 = arith.constant 0 : i32
        %110 = tpu.memref_slice %arg8[%109, %c0_i32_46] : memref<512x128xf32, #tpu.memory_space<any>> -> memref<1x128xf32, #tpu.memory_space<any>>
        %c0_i32_47 = arith.constant 0 : i32
        %111 = tpu.memref_slice %arg10[%61, %105, %c0_i32_47] : memref<2x16x128xf32, #tpu.memory_space<vmem>> -> memref<1x1x128xf32, #tpu.memory_space<vmem>>
        %112 = tpu.memref_squeeze %111 : memref<1x1x128xf32, #tpu.memory_space<vmem>> -> memref<1x128xf32, #tpu.memory_space<vmem>>
        %113 = tpu.memref_slice %arg11[%61] : memref<2x!tpu.dma_semaphore, #tpu.memory_space<semaphore_mem>> -> memref<1x!tpu.dma_semaphore, #tpu.memory_space<semaphore_mem>>
        %114 = tpu.memref_squeeze %113 : memref<1x!tpu.dma_semaphore, #tpu.memory_space<semaphore_mem>> -> memref<!tpu.dma_semaphore, #tpu.memory_space<semaphore_mem>>
        tpu.enqueue_dma source(%110 : memref<1x128xf32, #tpu.memory_space<any>>) target(%112 : memref<1x128xf32, #tpu.memory_space<vmem>>) target_semaphore(%114 : memref<!tpu.dma_semaphore, #tpu.memory_space<semaphore_mem>>)
        %c5_i32 = arith.constant 5 : i32
        %115 = arith.addi %64, %c5_i32 : i32
        %116 = arith.addi %62, %115 : i32
        %117 = arith.index_cast %59 : i32 to index
        %118 = arith.index_cast %116 : i32 to index
        %119 = memref.load %arg2[%117, %118] : memref<2x16xi32, #tpu.memory_space<smem>>
        %c0_i32_48 = arith.constant 0 : i32
        %120 = tpu.memref_slice %arg8[%119, %c0_i32_48] : memref<512x128xf32, #tpu.memory_space<any>> -> memref<1x128xf32, #tpu.memory_space<any>>
        %c0_i32_49 = arith.constant 0 : i32
        %121 = tpu.memref_slice %arg10[%61, %115, %c0_i32_49] : memref<2x16x128xf32, #tpu.memory_space<vmem>> -> memref<1x1x128xf32, #tpu.memory_space<vmem>>
        %122 = tpu.memref_squeeze %121 : memref<1x1x128xf32, #tpu.memory_space<vmem>> -> memref<1x128xf32, #tpu.memory_space<vmem>>
        %123 = tpu.memref_slice %arg11[%61] : memref<2x!tpu.dma_semaphore, #tpu.memory_space<semaphore_mem>> -> memref<1x!tpu.dma_semaphore, #tpu.memory_space<semaphore_mem>>
        %124 = tpu.memref_squeeze %123 : memref<1x!tpu.dma_semaphore, #tpu.memory_space<semaphore_mem>> -> memref<!tpu.dma_semaphore, #tpu.memory_space<semaphore_mem>>
        tpu.enqueue_dma source(%120 : memref<1x128xf32, #tpu.memory_space<any>>) target(%122 : memref<1x128xf32, #tpu.memory_space<vmem>>) target_semaphore(%124 : memref<!tpu.dma_semaphore, #tpu.memory_space<semaphore_mem>>)
        %c6_i32 = arith.constant 6 : i32
        %125 = arith.addi %64, %c6_i32 : i32
        %126 = arith.addi %62, %125 : i32
        %127 = arith.index_cast %59 : i32 to index
        %128 = arith.index_cast %126 : i32 to index
        %129 = memref.load %arg2[%127, %128] : memref<2x16xi32, #tpu.memory_space<smem>>
        %c0_i32_50 = arith.constant 0 : i32
        %130 = tpu.memref_slice %arg8[%129, %c0_i32_50] : memref<512x128xf32, #tpu.memory_space<any>> -> memref<1x128xf32, #tpu.memory_space<any>>
        %c0_i32_51 = arith.constant 0 : i32
        %131 = tpu.memref_slice %arg10[%61, %125, %c0_i32_51] : memref<2x16x128xf32, #tpu.memory_space<vmem>> -> memref<1x1x128xf32, #tpu.memory_space<vmem>>
        %132 = tpu.memref_squeeze %131 : memref<1x1x128xf32, #tpu.memory_space<vmem>> -> memref<1x128xf32, #tpu.memory_space<vmem>>
        %133 = tpu.memref_slice %arg11[%61] : memref<2x!tpu.dma_semaphore, #tpu.memory_space<semaphore_mem>> -> memref<1x!tpu.dma_semaphore, #tpu.memory_space<semaphore_mem>>
        %134 = tpu.memref_squeeze %133 : memref<1x!tpu.dma_semaphore, #tpu.memory_space<semaphore_mem>> -> memref<!tpu.dma_semaphore, #tpu.memory_space<semaphore_mem>>
        tpu.enqueue_dma source(%130 : memref<1x128xf32, #tpu.memory_space<any>>) target(%132 : memref<1x128xf32, #tpu.memory_space<vmem>>) target_semaphore(%134 : memref<!tpu.dma_semaphore, #tpu.memory_space<semaphore_mem>>)
        %c7_i32 = arith.constant 7 : i32
        %135 = arith.addi %64, %c7_i32 : i32
        %136 = arith.addi %62, %135 : i32
        %137 = arith.index_cast %59 : i32 to index
        %138 = arith.index_cast %136 : i32 to index
        %139 = memref.load %arg2[%137, %138] : memref<2x16xi32, #tpu.memory_space<smem>>
        %c0_i32_52 = arith.constant 0 : i32
        %140 = tpu.memref_slice %arg8[%139, %c0_i32_52] : memref<512x128xf32, #tpu.memory_space<any>> -> memref<1x128xf32, #tpu.memory_space<any>>
        %c0_i32_53 = arith.constant 0 : i32
        %141 = tpu.memref_slice %arg10[%61, %135, %c0_i32_53] : memref<2x16x128xf32, #tpu.memory_space<vmem>> -> memref<1x1x128xf32, #tpu.memory_space<vmem>>
        %142 = tpu.memref_squeeze %141 : memref<1x1x128xf32, #tpu.memory_space<vmem>> -> memref<1x128xf32, #tpu.memory_space<vmem>>
        %143 = tpu.memref_slice %arg11[%61] : memref<2x!tpu.dma_semaphore, #tpu.memory_space<semaphore_mem>> -> memref<1x!tpu.dma_semaphore, #tpu.memory_space<semaphore_mem>>
        %144 = tpu.memref_squeeze %143 : memref<1x!tpu.dma_semaphore, #tpu.memory_space<semaphore_mem>> -> memref<!tpu.dma_semaphore, #tpu.memory_space<semaphore_mem>>
        tpu.enqueue_dma source(%140 : memref<1x128xf32, #tpu.memory_space<any>>) target(%142 : memref<1x128xf32, #tpu.memory_space<vmem>>) target_semaphore(%144 : memref<!tpu.dma_semaphore, #tpu.memory_space<semaphore_mem>>)
      }
      %c2_i32_34 = arith.constant 2 : i32
    } else {
    }
    %c16_i32 = arith.constant 16 : i32
    %10 = arith.muli %arg1, %c16_i32 : i32
    %11 = tpu.assume_multiple %10, 16 : i32
    %12 = arith.index_cast %11 : i32 to index
    %c0 = arith.constant 0 : index
    %13 = vector.load %arg4[%12, %c0] : memref<16x128xf32, #tpu.memory_space<vmem>>, vector<16x128xf32>
    %c0_4 = arith.constant 0 : index
    %c0_5 = arith.constant 0 : index
    %14 = vector.load %arg5[%c0_4, %c0_5] : memref<2x128xf32, #tpu.memory_space<vmem>>, vector<1x128xf32>
    %c1 = arith.constant 1 : index
    %c0_6 = arith.constant 0 : index
    %15 = vector.load %arg5[%c1, %c0_6] : memref<2x128xf32, #tpu.memory_space<vmem>>, vector<1x128xf32>
    %16 = arith.subf %15, %14 : vector<1x128xf32>
    %17 = vector.broadcast %14 : vector<1x128xf32> to vector<16x128xf32>
    %18 = arith.addf %13, %17 : vector<16x128xf32>
    %c0_7 = arith.constant 0 : index
    %c0_8 = arith.constant 0 : index
    %19 = vector.load %arg3[%c0_7, %c0_8] : memref<16x1xf32, #tpu.memory_space<vmem>>, vector<16x1xf32>
    %20 = vector.broadcast %19 : vector<16x1xf32> to vector<16x128xf32>
    %21 = vector.broadcast %16 : vector<1x128xf32> to vector<16x128xf32>
    %22 = arith.mulf %20, %21 : vector<16x128xf32>
    %23 = arith.addf %18, %22 : vector<16x128xf32>
    %c0_i32_9 = arith.constant 0 : i32
    %c0_i32_10 = arith.constant 0 : i32
    %24 = tpu.memref_slice %arg8[%c0_i32_9, %c0_i32_10] : memref<512x128xf32, #tpu.memory_space<any>> -> memref<16x128xf32, #tpu.memory_space<any>>
    %c0_i32_11 = arith.constant 0 : i32
    %c0_i32_12 = arith.constant 0 : i32
    %25 = tpu.memref_slice %arg10[%2, %c0_i32_11, %c0_i32_12] : memref<2x16x128xf32, #tpu.memory_space<vmem>> -> memref<1x16x128xf32, #tpu.memory_space<vmem>>
    %26 = tpu.memref_squeeze %25 : memref<1x16x128xf32, #tpu.memory_space<vmem>> -> memref<16x128xf32, #tpu.memory_space<vmem>>
    %27 = tpu.memref_slice %arg11[%2] : memref<2x!tpu.dma_semaphore, #tpu.memory_space<semaphore_mem>> -> memref<1x!tpu.dma_semaphore, #tpu.memory_space<semaphore_mem>>
    %28 = tpu.memref_squeeze %27 : memref<1x!tpu.dma_semaphore, #tpu.memory_space<semaphore_mem>> -> memref<!tpu.dma_semaphore, #tpu.memory_space<semaphore_mem>>
    tpu.wait_dma2 semaphore(%28 : memref<!tpu.dma_semaphore, #tpu.memory_space<semaphore_mem>>) src(%24 : memref<16x128xf32, #tpu.memory_space<any>>) dst(%26 : memref<16x128xf32, #tpu.memory_space<vmem>>)
    %29 = arith.index_cast %2 : i32 to index
    %c0_13 = arith.constant 0 : index
    %c0_14 = arith.constant 0 : index
    %30 = vector.load %arg10[%29, %c0_13, %c0_14] : memref<2x16x128xf32, #tpu.memory_space<vmem>>, vector<1x16x128xf32>
    %31 = vector.shape_cast %30 : vector<1x16x128xf32> to vector<16x128xf32>
    %32 = arith.addf %31, %23 : vector<16x128xf32>
    %cst = arith.constant dense<0.000000e+00> : vector<16xf32>
    %33 = vector.multi_reduction <add>, %32, %cst [1] : vector<16x128xf32> to vector<16xf32>
    %34 = vector.shape_cast %33 : vector<16xf32> to vector<16x1xf32>
    %cst_15 = arith.constant 1.280000e+02 : f32
    %35 = vector.broadcast %cst_15 : f32 to vector<16x1xf32>
    %36 = arith.divf %34, %35 : vector<16x1xf32>
    %37 = vector.broadcast %36 : vector<16x1xf32> to vector<16x128xf32>
    %38 = arith.subf %32, %37 : vector<16x128xf32>
    %39 = arith.mulf %38, %38 : vector<16x128xf32>
    %cst_16 = arith.constant dense<0.000000e+00> : vector<16xf32>
    %40 = vector.multi_reduction <add>, %39, %cst_16 [1] : vector<16x128xf32> to vector<16xf32>
    %41 = vector.shape_cast %40 : vector<16xf32> to vector<16x1xf32>
    %cst_17 = arith.constant 1.280000e+02 : f32
    %42 = vector.broadcast %cst_17 : f32 to vector<16x1xf32>
    %43 = arith.divf %41, %42 : vector<16x1xf32>
    %cst_18 = arith.constant 9.99999974E-6 : f32
    %44 = vector.broadcast %cst_18 : f32 to vector<16x1xf32>
    %45 = arith.addf %43, %44 : vector<16x1xf32>
    %46 = math.rsqrt %45 : vector<16x1xf32>
    %47 = vector.broadcast %46 : vector<16x1xf32> to vector<16x128xf32>
    %48 = arith.mulf %38, %47 : vector<16x128xf32>
    %c0_19 = arith.constant 0 : index
    %c0_20 = arith.constant 0 : index
    %49 = vector.load %arg6[%c0_19, %c0_20] : memref<1x128xf32, #tpu.memory_space<vmem>>, vector<1x128xf32>
    %50 = vector.broadcast %49 : vector<1x128xf32> to vector<16x128xf32>
    %51 = arith.mulf %48, %50 : vector<16x128xf32>
    %c0_21 = arith.constant 0 : index
    %c0_22 = arith.constant 0 : index
    %52 = vector.load %arg7[%c0_21, %c0_22] : memref<1x128xf32, #tpu.memory_space<vmem>>, vector<1x128xf32>
    %53 = vector.broadcast %52 : vector<1x128xf32> to vector<16x128xf32>
    %54 = arith.addf %51, %53 : vector<16x128xf32>
    %c0_23 = arith.constant 0 : index
    %c0_24 = arith.constant 0 : index
    %55 = vector.load %arg9[%c0_23, %c0_24] : memref<16x128xf32, #tpu.memory_space<vmem>>, vector<16x128xf32>
    tpu.vector_store %arg9[%c0_23, %c0_24], %54 {strides = array<i32>} : memref<16x128xf32, #tpu.memory_space<vmem>>, vector<16x128xf32>,
    return
  }
  func.func @transform_0(%arg0: i32, %arg1: i32, %arg2: memref<2x16xi32, #tpu.memory_space<smem>>) -> (i32, i32) {
    %c1_i32 = arith.constant 1 : i32
    %0 = arith.muli %arg0, %c1_i32 : i32
    %1 = arith.addi %0, %arg1 : i32
    %c0_i32 = arith.constant 0 : i32
    %c0_i32_0 = arith.constant 0 : i32
    return %1, %c0_i32 : i32, i32
  }
  func.func @transform_1(%arg0: i32, %arg1: i32, %arg2: memref<2x16xi32, #tpu.memory_space<smem>>) -> (i32, i32) {
    %c0_i32 = arith.constant 0 : i32
    %c0_i32_0 = arith.constant 0 : i32
    %c0_i32_1 = arith.constant 0 : i32
    return %c0_i32, %c0_i32_0 : i32, i32
  }
  func.func @transform_2(%arg0: i32, %arg1: i32, %arg2: memref<2x16xi32, #tpu.memory_space<smem>>) -> (i32, i32) {
    %c0_i32 = arith.constant 0 : i32
    %c0_i32_0 = arith.constant 0 : i32
    %c0_i32_1 = arith.constant 0 : i32
    return %c0_i32, %c0_i32_0 : i32, i32
  }
  func.func @transform_3(%arg0: i32, %arg1: i32, %arg2: memref<2x16xi32, #tpu.memory_space<smem>>) -> (i32, i32) {
    %c0_i32 = arith.constant 0 : i32
    %c0_i32_0 = arith.constant 0 : i32
    %c0_i32_1 = arith.constant 0 : i32
    return %c0_i32, %c0_i32_0 : i32, i32
  }
  func.func @transform_4(%arg0: i32, %arg1: i32, %arg2: memref<2x16xi32, #tpu.memory_space<smem>>) -> (i32, i32) {
    %c0_i32 = arith.constant 0 : i32
    %c0_i32_0 = arith.constant 0 : i32
    %c0_i32_1 = arith.constant 0 : i32
    return %c0_i32, %c0_i32_0 : i32, i32
  }
  func.func @transform_6(%arg0: i32, %arg1: i32, %arg2: memref<2x16xi32, #tpu.memory_space<smem>>) -> (i32, i32) {
    %c1_i32 = arith.constant 1 : i32
    %0 = arith.muli %arg0, %c1_i32 : i32
    %1 = arith.addi %0, %arg1 : i32
    %c0_i32 = arith.constant 0 : i32
    %c0_i32_0 = arith.constant 0 : i32
    return %1, %c0_i32 : i32, i32
  }
}

</mosaic_0001>

<llo_original>
// kernel: tpu_custom_call.1
$region0: #{tpu_custom_call.1}
  #allocation0 [shape = 'u32[]', space=smem, size = 0x4, offset = 0x4, fixed_abs, tag = 'smem constant byte address 0x4 - core index']
  #allocation1 [shape = 'u32[72,128]{1,0:T(1,128)}', space=vmem, size = 0x9000, scoped, tag = 'internal scratch']
  #allocation2 [shape = 'f32[2,16,128]{2,1,0:T(8,128)}', space=vmem, size = 0x4000, scoped, tag = 'scratch operand']
  #allocation3 [shape = 's32[2]{0}', space=sflag, size = 0x8, scoped, tag = 'scratch operand']
  #allocation4 [shape = 's32[1]{0}', space=sflag, size = 0x4, scoped, tag = 'scoped memory for tpu_custom_call.1']
  #allocation5 [shape = 'u8[1024]{0}', space=smem, size = 0x400, scoped, tag = 'prefetched SMEM operand 0']
  #allocation8 [shape = 's32[]', space=sflag, size = 0x4, offset = 0, fixed_abs, tag = 'sflag constant byte address 0x0 - dummy sync flag']
  #allocation9 [shape = 's32[]', space=sflag, size = 0x4, offset = 0, fixed_abs, tag = 'sflag constant byte address 0x0 - dummy sync flag']
  #allocation10 [shape = 'u32[]', space=smem, size = 0x4, offset = 0x44, fixed_abs, tag = 'smem constant byte address 0x44 - assertion arg 0']
  #allocation11 [shape = 'u32[]', space=smem, size = 0x4, offset = 0x48, fixed_abs, tag = 'smem constant byte address 0x48 - assertion arg 1']
  #allocation12 [shape = 's32[]', space=sflag, size = 0x4, offset = 0, fixed_abs, tag = 'sflag constant byte address 0x0 - dummy sync flag']
  #allocation13 [shape = 's32[]', space=sflag, size = 0x4, offset = 0, fixed_abs, tag = 'sflag constant byte address 0x0 - dummy sync flag']
  #allocation14 [shape = 's32[]', space=sflag, size = 0x4, offset = 0, fixed_abs, tag = 'sflag constant byte address 0x0 - dummy sync flag']
  #allocation15 [shape = 's32[]', space=sflag, size = 0x4, offset = 0, fixed_abs, tag = 'sflag constant byte address 0x0 - dummy sync flag']
  #allocation16 [shape = 's32[]', space=sflag, size = 0x4, offset = 0, fixed_abs, tag = 'sflag constant byte address 0x0 - dummy sync flag']
  #allocation17 [shape = 's32[]', space=sflag, size = 0x4, offset = 0, fixed_abs, tag = 'sflag constant byte address 0x0 - dummy sync flag']
  #allocation18 [shape = 's32[]', space=sflag, size = 0x4, offset = 0, fixed_abs, tag = 'sflag constant byte address 0x0 - dummy sync flag']
  #allocation19 [shape = 's32[]', space=sflag, size = 0x4, offset = 0, fixed_abs, tag = 'sflag constant byte address 0x0 - dummy sync flag']
  #allocation20 [shape = 's32[]', space=sflag, size = 0x4, offset = 0, fixed_abs, tag = 'sflag constant byte address 0x0 - dummy sync flag']
  #allocation21 [shape = 's32[]', space=sflag, size = 0x4, offset = 0, fixed_abs, tag = 'sflag constant byte address 0x0 - dummy sync flag']
  #allocation22 [shape = 's32[]', space=sflag, size = 0x4, offset = 0, fixed_abs, tag = 'sflag constant byte address 0x0 - dummy sync flag']
  #allocation23 [shape = 's32[]', space=sflag, size = 0x4, offset = 0, fixed_abs, tag = 'sflag constant byte address 0x0 - dummy sync flag']
  #allocation24 [shape = 's32[]', space=sflag, size = 0x4, offset = 0, fixed_abs, tag = 'sflag constant byte address 0x0 - dummy sync flag']
  #allocation25 [shape = 's32[]', space=sflag, size = 0x4, offset = 0, fixed_abs, tag = 'sflag constant byte address 0x0 - dummy sync flag']
  #allocation26 [shape = 's32[]', space=sflag, size = 0x4, offset = 0, fixed_abs, tag = 'sflag constant byte address 0x0 - dummy sync flag']
  #allocation27 [shape = 's32[]', space=sflag, size = 0x4, offset = 0, fixed_abs, tag = 'sflag constant byte address 0x0 - dummy sync flag']
  #allocation28 [shape = 's32[]', space=sflag, size = 0x4, offset = 0, fixed_abs, tag = 'sflag constant byte address 0x0 - dummy sync flag']
  #allocation29 [shape = 's32[]', space=sflag, size = 0x4, offset = 0, fixed_abs, tag = 'sflag constant byte address 0x0 - dummy sync flag']
  #allocation30 [shape = 's32[]', space=sflag, size = 0x4, offset = 0, fixed_abs, tag = 'sflag constant byte address 0x0 - dummy sync flag']
  #allocation31 [shape = 's32[]', space=sflag, size = 0x4, offset = 0, fixed_abs, tag = 'sflag constant byte address 0x0 - dummy sync flag']
  #allocation32 [shape = 's32[]', space=sflag, size = 0x4, offset = 0, fixed_abs, tag = 'sflag constant byte address 0x0 - dummy sync flag']
  #allocation33 [shape = 's32[]', space=sflag, size = 0x4, offset = 0, fixed_abs, tag = 'sflag constant byte address 0x0 - dummy sync flag']
  #allocation34 [shape = 's32[]', space=sflag, size = 0x4, offset = 0, fixed_abs, tag = 'sflag constant byte address 0x0 - dummy sync flag']
  #allocation35 [shape = 's32[]', space=sflag, size = 0x4, offset = 0, fixed_abs, tag = 'sflag constant byte address 0x0 - dummy sync flag']
  #allocation36 [shape = 's32[]', space=sflag, size = 0x4, offset = 0, fixed_abs, tag = 'sflag constant byte address 0x0 - dummy sync flag']
  #allocation37 [shape = 's32[]', space=sflag, size = 0x4, offset = 0, fixed_abs, tag = 'sflag constant byte address 0x0 - dummy sync flag']
  #allocation38 [shape = 's32[]', space=sflag, size = 0x4, offset = 0, fixed_abs, tag = 'sflag constant byte address 0x0 - dummy sync flag']
  #allocation39 [shape = 's32[]', space=sflag, size = 0x4, offset = 0, fixed_abs, tag = 'sflag constant byte address 0x0 - dummy sync flag']
  #allocation40 [shape = 's32[]', space=sflag, size = 0x4, offset = 0, fixed_abs, tag = 'sflag constant byte address 0x0 - dummy sync flag']
  #allocation41 [shape = 's32[]', space=sflag, size = 0x4, offset = 0, fixed_abs, tag = 'sflag constant byte address 0x0 - dummy sync flag']
  %s0 = inlined_call_operand.vmem [shape: s32[2,16], index: 0, kind: input, shape index: {}]
  %s1 = inlined_call_operand.vmem [shape: f32[32,1], index: 1, kind: input, shape index: {}]
  %s2 = inlined_call_operand.vmem [shape: f32[16,128], index: 2, kind: input, shape index: {}]
  %s3 = inlined_call_operand.vmem [shape: f32[2,128], index: 3, kind: input, shape index: {}]
  %s4 = inlined_call_operand.vmem [shape: f32[1,128], index: 4, kind: input, shape index: {}]
  %s5 = inlined_call_operand.vmem [shape: f32[1,128], index: 5, kind: input, shape index: {}]
  %s6 = inlined_call_operand.hbm [shape: f32[512,128], index: 6, kind: input, shape index: {}]
  %s7 = inlined_call_operand.hbm [shape: f32[32,128], index: 7, kind: output, shape index: {}]
  %s8 = sld [smem:[#allocation0]]
  $region139: #{tpu_custom_call.1} parent=0
    _
  %s10 = ssub.s32 1, %s8
  %s11 = scalar_select 0, %s10, %s8
  %s13 = sshll.u32 %s0, 4
  %s14 = int_to_ptr.vmem [resolvable:$true] %s13
  %16 = dma.vmem_to_smem %s14, 32, [#allocation5], [#allocation4]
  %18 = dma.done [#allocation4], 32
  %19 = sfence
  $region1: #{tpu_custom_call.1} parent=0
    #allocation6 [shape = 'u8[16384]{0}', space=vmem, size = 0x4000, scoped, tag = 'output window, operand 0']
    #allocation7 [shape = 's32[2]{0}', space=sflag, size = 0x8, scoped, tag = 'scoped memory for tpu_custom_call.1']
    %20 = vsyncpa [#allocation7], 0
    %s21 = scalar_lea.sflag [#allocation7], 1
    %22 = vsyncpa %s21, 0
    loop: start=0, step=1, limit=4
    $region2: #{tpu_custom_call.1} parent=1 // loop_pre_header
      _
    $region3: #{tpu_custom_call.1} parent=1 // loop_header
      %s24 = sphi 0, %s28
      %p25 = scmp.ge.s32.totalorder %s24, 4
      %s31 = sphi 0, %s43
      %s32 = sphi 0, %s39
      %s33 = sphi 0, %s31
      %s34 = sphi 0, %s32
      %s35 = sphi 0, %s33
      %s36 = sphi 0, %s34
      %s48 = sphi 0, %s50
      %s51 = sphi 0, %s48
      %s52 = sphi 0, %s51
      %s68 = sphi 0, %s52
      %s72 = sphi 0, %s72
      %s74 = sphi 0, %s72
      %s75 = sphi 0, %s74
      %s89 = sphi 0, %s75
      %s93 = sphi 0, %s93
      %s95 = sphi 0, %s93
      %s96 = sphi 0, %s95
      %s110 = sphi 0, %s96
      %s114 = sphi 0, %s114
      %s116 = sphi 0, %s114
      %s117 = sphi 0, %s116
      %s131 = sphi 0, %s117
      %s135 = sphi 0, %s135
      %s137 = sphi 0, %s135
      %s138 = sphi 0, %s137
      %s152 = sphi 0, %s138
      %s160 = sphi 0, %s162
      %s163 = sphi 0, %s160
      %s164 = sphi 0, %s163
      %s180 = sphi 0, %s164
    $region4: #{tpu_custom_call.1} parent=1 // loop_header_branch
      %27 = sbr.rel (%p25) target = $region8
    $region5: #{tpu_custom_call.1} parent=1 // loop_body
      %s29 = ssub.s32 %s24, 1
      %s30 = ssub.s32 %s24, 2
      %s37 = sadd.s32 1, %s32
      %p38 = scmp.ge.s32.totalorder %s37, 1
      %s39 = scalar_select %p38, 0, %s37
      %s40 = sadd.s32 1, %s31
      %s41 = scalar_select %p38, %s40, %s31
      %p42 = scmp.ge.s32.totalorder %s41, 2
      %s43 = scalar_select %p42, 0, %s41
      %s44 = sadd.s32 %s31, %s32
      %s45 = sadd.s32 %s43, %s39
      %s46 = ssub.s32 %s44, %s45
      %p47 = scmp.eq.s32.totalorder %s46, 0
      %s49 = sadd.s32 %s48, 1
      %s50 = scalar_select %p47, %s48, %s49
      %p53 = pneg %p47
      %p54 = scmp.eq.s32.totalorder %s24, 1
      %p55 = por %p53, %p54
      %p56 = scmp.ne.s32.totalorder %s48, %s51
      %p57 = scmp.eq.s32.totalorder %s24, 0
      %p58 = por %p56, %p57
      %p59 = scmp.ne.s32.totalorder %s48, %s51
      %p60 = scmp.eq.s32.totalorder %s29, 1
      %p61 = por %p59, %p60
      %p62 = scmp.ne.s32.totalorder %s51, %s52
      %p63 = scmp.eq.s32.totalorder %s29, 0
      %p64 = por %p62, %p63
      %p65 = scmp.ne.s32.totalorder %s51, %s52
      %p66 = scmp.eq.s32.totalorder %s30, 1
      %p67 = por %p65, %p66
      %p69 = scmp.ne.s32.totalorder %s52, %s68
      %p70 = scmp.eq.s32.totalorder %s30, 0
      %p71 = por %p69, %p70
      %s73 = sadd.s32 %s72, 1
      %p76 = scmp.eq.s32.totalorder %s24, 1
      %p77 = scmp.ne.s32.totalorder %s72, %s74
      %p78 = scmp.eq.s32.totalorder %s24, 0
      %p79 = por %p77, %p78
      %p80 = scmp.ne.s32.totalorder %s72, %s74
      %p81 = scmp.eq.s32.totalorder %s29, 1
      %p82 = por %p80, %p81
      %p83 = scmp.ne.s32.totalorder %s74, %s75
      %p84 = scmp.eq.s32.totalorder %s29, 0
      %p85 = por %p83, %p84
      %p86 = scmp.ne.s32.totalorder %s74, %s75
      %p87 = scmp.eq.s32.totalorder %s30, 1
      %p88 = por %p86, %p87
      %p90 = scmp.ne.s32.totalorder %s75, %s89
      %p91 = scmp.eq.s32.totalorder %s30, 0
      %p92 = por %p90, %p91
      %s94 = sadd.s32 %s93, 1
      %p97 = scmp.eq.s32.totalorder %s24, 1
      %p98 = scmp.ne.s32.totalorder %s93, %s95
      %p99 = scmp.eq.s32.totalorder %s24, 0
      %p100 = por %p98, %p99
      %p101 = scmp.ne.s32.totalorder %s93, %s95
      %p102 = scmp.eq.s32.totalorder %s29, 1
      %p103 = por %p101, %p102
      %p104 = scmp.ne.s32.totalorder %s95, %s96
      %p105 = scmp.eq.s32.totalorder %s29, 0
      %p106 = por %p104, %p105
      %p107 = scmp.ne.s32.totalorder %s95, %s96
      %p108 = scmp.eq.s32.totalorder %s30, 1
      %p109 = por %p107, %p108
      %p111 = scmp.ne.s32.totalorder %s96, %s110
      %p112 = scmp.eq.s32.totalorder %s30, 0
      %p113 = por %p111, %p112
      %s115 = sadd.s32 %s114, 1
      %p118 = scmp.eq.s32.totalorder %s24, 1
      %p119 = scmp.ne.s32.totalorder %s114, %s116
      %p120 = scmp.eq.s32.totalorder %s24, 0
      %p121 = por %p119, %p120
      %p122 = scmp.ne.s32.totalorder %s114, %s116
      %p123 = scmp.eq.s32.totalorder %s29, 1
      %p124 = por %p122, %p123
      %p125 = scmp.ne.s32.totalorder %s116, %s117
      %p126 = scmp.eq.s32.totalorder %s29, 0
      %p127 = por %p125, %p126
      %p128 = scmp.ne.s32.totalorder %s116, %s117
      %p129 = scmp.eq.s32.totalorder %s30, 1
      %p130 = por %p128, %p129
      %p132 = scmp.ne.s32.totalorder %s117, %s131
      %p133 = scmp.eq.s32.totalorder %s30, 0
      %p134 = por %p132, %p133
      %s136 = sadd.s32 %s135, 1
      %p139 = scmp.eq.s32.totalorder %s24, 1
      %p140 = scmp.ne.s32.totalorder %s135, %s137
      %p141 = scmp.eq.s32.totalorder %s24, 0
      %p142 = por %p140, %p141
      %p143 = scmp.ne.s32.totalorder %s135, %s137
      %p144 = scmp.eq.s32.totalorder %s29, 1
      %p145 = por %p143, %p144
      %p146 = scmp.ne.s32.totalorder %s137, %s138
      %p147 = scmp.eq.s32.totalorder %s29, 0
      %p148 = por %p146, %p147
      %p149 = scmp.ne.s32.totalorder %s137, %s138
      %p150 = scmp.eq.s32.totalorder %s30, 1
      %p151 = por %p149, %p150
      %p153 = scmp.ne.s32.totalorder %s138, %s152
      %p154 = scmp.eq.s32.totalorder %s30, 0
      %p155 = por %p153, %p154
      %s156 = sadd.s32 %s31, %s32
      %s157 = sadd.s32 %s43, %s39
      %s158 = ssub.s32 %s156, %s157
      %p159 = scmp.eq.s32.totalorder %s158, 0
      %s161 = sadd.s32 %s160, 1
      %s162 = scalar_select %p159, %s160, %s161
      %p165 = pneg %p159
      %p166 = scmp.eq.s32.totalorder %s24, 1
      %p167 = por %p165, %p166
      %p168 = scmp.ne.s32.totalorder %s160, %s163
      %p169 = scmp.eq.s32.totalorder %s24, 0
      %p170 = por %p168, %p169
      %p171 = scmp.ne.s32.totalorder %s160, %s163
      %p172 = scmp.eq.s32.totalorder %s29, 1
      %p173 = por %p171, %p172
      %p174 = scmp.ne.s32.totalorder %s163, %s164
      %p175 = scmp.eq.s32.totalorder %s29, 0
      %p176 = por %p174, %p175
      %p177 = scmp.ne.s32.totalorder %s163, %s164
      %p178 = scmp.eq.s32.totalorder %s30, 1
      %p179 = por %p177, %p178
      %p181 = scmp.ne.s32.totalorder %s164, %s180
      %p182 = scmp.eq.s32.totalorder %s30, 0
      %p183 = por %p181, %p182
      %p184 = scmp.le.s32.totalorder 1, %s24
      %p185 = scmp.lt.s32.totalorder %s24, 3
      %p186 = pnand %p184, %p185
      %p187 = pneg %p186
      // Predicated region
      $region9: #{tpu_custom_call.1} parent=5 // pred_check
        _
      $region10: #{tpu_custom_call.1} parent=5 // pred_check_branch
        %189 = sbr.rel (%p186) target = $region12
      $region11: #{tpu_custom_call.1} parent=5 // pred_region
        %s190 = ssub.s32 %s24, 1
        // Predicated region
        $region13: #{tpu_custom_call.1} parent=11 // pred_check
          %p191 = pneg %p85
        $region14: #{tpu_custom_call.1} parent=11 // pred_check_branch
          %193 = sbr.rel (%p191) target = $region16
        $region15: #{tpu_custom_call.1} parent=11 // pred_region
          _
        $region16: #{tpu_custom_call.1} parent=11 // pred_fallthru
          _
        // Predicated region
        $region17: #{tpu_custom_call.1} parent=11 // pred_check
          %p194 = pneg %p106
        $region18: #{tpu_custom_call.1} parent=11 // pred_check_branch
          %196 = sbr.rel (%p194) target = $region20
        $region19: #{tpu_custom_call.1} parent=11 // pred_region
          _
        $region20: #{tpu_custom_call.1} parent=11 // pred_fallthru
          _
        // Predicated region
        $region21: #{tpu_custom_call.1} parent=11 // pred_check
          %p197 = pneg %p127
        $region22: #{tpu_custom_call.1} parent=11 // pred_check_branch
          %199 = sbr.rel (%p197) target = $region24
        $region23: #{tpu_custom_call.1} parent=11 // pred_region
          _
        $region24: #{tpu_custom_call.1} parent=11 // pred_fallthru
          _
        // Predicated region
        $region25: #{tpu_custom_call.1} parent=11 // pred_check
          %p200 = pneg %p148
        $region26: #{tpu_custom_call.1} parent=11 // pred_check_branch
          %202 = sbr.rel (%p200) target = $region28
        $region27: #{tpu_custom_call.1} parent=11 // pred_region
          _
        $region28: #{tpu_custom_call.1} parent=11 // pred_fallthru
          _
      $region12: #{tpu_custom_call.1} parent=5 // pred_fallthru
        _
      %p203 = scmp.lt.s32.totalorder %s24, 2
      // Predicated region
      $region29: #{tpu_custom_call.1} parent=5 // pred_check
        %p204 = pneg %p203
      $region30: #{tpu_custom_call.1} parent=5 // pred_check_branch
        %206 = sbr.rel (%p204) target = $region32
      $region31: #{tpu_custom_call.1} parent=5 // pred_region
        // Predicated region
        $region33: #{tpu_custom_call.1} parent=31 // pred_check
          %p207 = pneg %p58
        $region34: #{tpu_custom_call.1} parent=31 // pred_check_branch
          %209 = sbr.rel (%p207) target = $region36
        $region35: #{tpu_custom_call.1} parent=31 // pred_region
          %s210 = sadd.s32 %s31, %s32
          %s211 = smul.u32 2, %s210
          %p212 = scmp.lt.s32.totalorder %s211, 3
          %s213 = scalar_select %p212, %s211, 3
          %s214 = smul.addr %s213, 8
          %s215 = scalar_lea.vmem %s1, %s214
          %s216 = sadd.s32 %s31, %s32
          %s217 = smul.u32 2, %s216
        $region36: #{tpu_custom_call.1} parent=31 // pred_fallthru
          _
      $region32: #{tpu_custom_call.1} parent=5 // pred_fallthru
        _
      %p218 = scmp.le.s32.totalorder 1, %s24
      %p219 = scmp.lt.s32.totalorder %s24, 3
      %p220 = pnand %p218, %p219
      %p221 = pneg %p220
      // Predicated region
      $region37: #{tpu_custom_call.1} parent=5 // pred_check
        _
      $region38: #{tpu_custom_call.1} parent=5 // pred_check_branch
        %223 = sbr.rel (%p220) target = $region40
      $region39: #{tpu_custom_call.1} parent=5 // pred_region
        %s224 = ssub.s32 %s24, 1
        %s225 = sadd.s32 %s33, %s34
        %s226 = smul.u32 2, %s225
        %p227 = scmp.lt.s32.totalorder %s226, 3
        %s228 = scalar_select %p227, %s226, 3
        %s229 = smul.addr %s228, 8
        %s230 = scalar_lea.vmem %s1, %s229
        %p231 = pneg %p64
        %p232 = pneg %p61
        %p233 = pneg %p85
        %p234 = pneg %p82
        %p235 = pneg %p106
        %p236 = pneg %p103
        %p237 = pneg %p127
        %p238 = pneg %p124
        %p239 = pneg %p148
        %p240 = pneg %p145
        %p241 = pneg %p176
        %p242 = pneg %p173
        %s243 = sand.u32 %s163, 1
        %s244 = scalar_lea.sflag [#allocation7], %s243
        %s245 = sand.u32 %s163, 1
        %s246 = smul.addr %s245, 16
        %s247 = scalar_lea.vmem [#allocation6], %s246
        %s248 = sadd.s32 %s33, %s34
        %s249 = smul.u32 2, %s248
        %p250 = scmp.lt.s32.totalorder %s249, 3
        %s251 = scalar_select %p250, %s249, 3
        %s252 = smul.addr %s251, 8
        %s253 = scalar_lea.vmem %s1, %s252
        %s254 = sadd.s32 %s33, %s34
        %s255 = smul.u32 2, %s254
        %s256 = sadd.s32 %s33, %s34
        %s257 = smul.u32 2, %s256
        %s258 = sadd.s32 %s33, %s34
        %p259 = scmp.lt.s32.totalorder %s258, 0
        %s260 = ssub.s32 0, %s258
        %s261 = scalar_select %p259, %s260, %s258
        %s262 = sand.u32 %s261, 1
        %s263 = ssub.s32 0, %s262
        %s264 = scalar_select %p259, %s263, %s262
        %p265 = scmp.eq.s32.totalorder %s258, 0
        // Predicated region
        $region41: #{tpu_custom_call.1} parent=39 // pred_check
          %p266 = pneg %p265
        $region42: #{tpu_custom_call.1} parent=39 // pred_check_branch
          %268 = sbr.rel (%p266) target = $region44
        $region43: #{tpu_custom_call.1} parent=39 // pred_region
          %s269 = smul.u32 %s34, 16
          loop: start=0, step=1, limit=2
          $region45: #{tpu_custom_call.1} parent=43 // loop_pre_header
            _
          $region46: #{tpu_custom_call.1} parent=43 // loop_header
            %s271 = sphi 0, %s275
            %p272 = scmp.ge.s32.totalorder %s271, 2
          $region47: #{tpu_custom_call.1} parent=43 // loop_header_branch
            %274 = sbr.rel (%p272) target = $region51
          $region48: #{tpu_custom_call.1} parent=43 // loop_body
            %s276 = smul.u32 %s271, 8
            %s277 = sadd.s32 %s269, %s276
            %s278 = sshra.s32 %s277, 7
            %s279 = sand.u32 %s277, 127
            %s280 = sadd.s32 %s278, %s33
            %s281 = smul.u32 %s280, 128
            %s282 = sshra.s32 %s277, 7
            %s283 = sand.u32 %s277, 127
            %s284 = sadd.s32 %s281, %s283
            %s285 = sld [smem:[#allocation5 + %s284]]
            %s286 = scalar_lea.hbm %s6, %s285
            %s287 = smul.u32 %s264, 16
            %s288 = sadd.s32 %s276, %s287
            %s289 = scalar_lea.vmem [#allocation2], %s288
            %s290 = scalar_lea.sflag [#allocation3], %s264
            // Predicated region
            $region52: #{tpu_custom_call.1} parent=48 // pred_check
              _
            $region53: #{tpu_custom_call.1} parent=48 // pred_check_branch
              %292 = sbr.rel target = $region55
            $region54: #{tpu_custom_call.1} parent=48 // pred_region
              %293 = sst [smem:[#allocation10]] [#allocation9]
              %294 = sst [smem:[#allocation11]] [#allocation8]
            $region55: #{tpu_custom_call.1} parent=48 // pred_fallthru
              _
            %296 = shalt.err (0)
            %s298 = sshll.u32 %s286, 4
            %s299 = int_to_ptr.hbm [resolvable:$true] %s298
            %s300 = sshll.u32 %s289, 4
            %s301 = int_to_ptr.vmem [resolvable:$true] %s300
            %303 = dma.hbm_to_vmem [thread:$0]  %s299, 16, %s301, %s290
            %s304 = sadd.s32 %s276, 1
            %s305 = sadd.s32 %s269, %s304
            %s306 = sshra.s32 %s305, 7
            %s307 = sand.u32 %s305, 127
            %s308 = sadd.s32 %s306, %s33
            %s309 = smul.u32 %s308, 128
            %s310 = sshra.s32 %s305, 7
            %s311 = sand.u32 %s305, 127
            %s312 = sadd.s32 %s309, %s311
            %s313 = sld [smem:[#allocation5 + %s312]]
            %s314 = scalar_lea.hbm %s6, %s313
            %s315 = sadd.s32 %s304, %s287
            %s316 = scalar_lea.vmem [#allocation2], %s315
            // Predicated region
            $region56: #{tpu_custom_call.1} parent=48 // pred_check
              _
            $region57: #{tpu_custom_call.1} parent=48 // pred_check_branch
              %318 = sbr.rel target = $region59
            $region58: #{tpu_custom_call.1} parent=48 // pred_region
              %319 = sst [smem:[#allocation10]] [#allocation13]
              %320 = sst [smem:[#allocation11]] [#allocation12]
            $region59: #{tpu_custom_call.1} parent=48 // pred_fallthru
              _
            %322 = shalt.err (0)
            %s324 = sshll.u32 %s314, 4
            %s325 = int_to_ptr.hbm [resolvable:$true] %s324
            %s326 = sshll.u32 %s316, 4
            %s327 = int_to_ptr.vmem [resolvable:$true] %s326
            %329 = dma.hbm_to_vmem [thread:$0]  %s325, 16, %s327, %s290
            %s330 = sadd.s32 %s276, 2
            %s331 = sadd.s32 %s269, %s330
            %s332 = sshra.s32 %s331, 7
            %s333 = sand.u32 %s331, 127
            %s334 = sadd.s32 %s332, %s33
            %s335 = smul.u32 %s334, 128
            %s336 = sshra.s32 %s331, 7
            %s337 = sand.u32 %s331, 127
            %s338 = sadd.s32 %s335, %s337
            %s339 = sld [smem:[#allocation5 + %s338]]
            %s340 = scalar_lea.hbm %s6, %s339
            %s341 = sadd.s32 %s330, %s287
            %s342 = scalar_lea.vmem [#allocation2], %s341
            // Predicated region
            $region60: #{tpu_custom_call.1} parent=48 // pred_check
              _
            $region61: #{tpu_custom_call.1} parent=48 // pred_check_branch
              %344 = sbr.rel target = $region63
            $region62: #{tpu_custom_call.1} parent=48 // pred_region
              %345 = sst [smem:[#allocation10]] [#allocation15]
              %346 = sst [smem:[#allocation11]] [#allocation14]
            $region63: #{tpu_custom_call.1} parent=48 // pred_fallthru
              _
            %348 = shalt.err (0)
            %s350 = sshll.u32 %s340, 4
            %s351 = int_to_ptr.hbm [resolvable:$true] %s350
            %s352 = sshll.u32 %s342, 4
            %s353 = int_to_ptr.vmem [resolvable:$true] %s352
            %355 = dma.hbm_to_vmem [thread:$0]  %s351, 16, %s353, %s290
            %s356 = sadd.s32 %s276, 3
            %s357 = sadd.s32 %s269, %s356
            %s358 = sshra.s32 %s357, 7
            %s359 = sand.u32 %s357, 127
            %s360 = sadd.s32 %s358, %s33
            %s361 = smul.u32 %s360, 128
            %s362 = sshra.s32 %s357, 7
            %s363 = sand.u32 %s357, 127
            %s364 = sadd.s32 %s361, %s363
            %s365 = sld [smem:[#allocation5 + %s364]]
            %s366 = scalar_lea.hbm %s6, %s365
            %s367 = sadd.s32 %s356, %s287
            %s368 = scalar_lea.vmem [#allocation2], %s367
            // Predicated region
            $region64: #{tpu_custom_call.1} parent=48 // pred_check
              _
            $region65: #{tpu_custom_call.1} parent=48 // pred_check_branch
              %370 = sbr.rel target = $region67
            $region66: #{tpu_custom_call.1} parent=48 // pred_region
              %371 = sst [smem:[#allocation10]] [#allocation17]
              %372 = sst [smem:[#allocation11]] [#allocation16]
            $region67: #{tpu_custom_call.1} parent=48 // pred_fallthru
              _
            %374 = shalt.err (0)
            %s376 = sshll.u32 %s366, 4
            %s377 = int_to_ptr.hbm [resolvable:$true] %s376
            %s378 = sshll.u32 %s368, 4
            %s379 = int_to_ptr.vmem [resolvable:$true] %s378
            %381 = dma.hbm_to_vmem [thread:$0]  %s377, 16, %s379, %s290
            %s382 = sadd.s32 %s276, 4
            %s383 = sadd.s32 %s269, %s382
            %s384 = sshra.s32 %s383, 7
            %s385 = sand.u32 %s383, 127
            %s386 = sadd.s32 %s384, %s33
            %s387 = smul.u32 %s386, 128
            %s388 = sshra.s32 %s383, 7
            %s389 = sand.u32 %s383, 127
            %s390 = sadd.s32 %s387, %s389
            %s391 = sld [smem:[#allocation5 + %s390]]
            %s392 = scalar_lea.hbm %s6, %s391
            %s393 = sadd.s32 %s382, %s287
            %s394 = scalar_lea.vmem [#allocation2], %s393
            // Predicated region
            $region68: #{tpu_custom_call.1} parent=48 // pred_check
              _
            $region69: #{tpu_custom_call.1} parent=48 // pred_check_branch
              %396 = sbr.rel target = $region71
            $region70: #{tpu_custom_call.1} parent=48 // pred_region
              %397 = sst [smem:[#allocation10]] [#allocation19]
              %398 = sst [smem:[#allocation11]] [#allocation18]
            $region71: #{tpu_custom_call.1} parent=48 // pred_fallthru
              _
            %400 = shalt.err (0)
            %s402 = sshll.u32 %s392, 4
            %s403 = int_to_ptr.hbm [resolvable:$true] %s402
            %s404 = sshll.u32 %s394, 4
            %s405 = int_to_ptr.vmem [resolvable:$true] %s404
            %407 = dma.hbm_to_vmem [thread:$0]  %s403, 16, %s405, %s290
            %s408 = sadd.s32 %s276, 5
            %s409 = sadd.s32 %s269, %s408
            %s410 = sshra.s32 %s409, 7
            %s411 = sand.u32 %s409, 127
            %s412 = sadd.s32 %s410, %s33
            %s413 = smul.u32 %s412, 128
            %s414 = sshra.s32 %s409, 7
            %s415 = sand.u32 %s409, 127
            %s416 = sadd.s32 %s413, %s415
            %s417 = sld [smem:[#allocation5 + %s416]]
            %s418 = scalar_lea.hbm %s6, %s417
            %s419 = sadd.s32 %s408, %s287
            %s420 = scalar_lea.vmem [#allocation2], %s419
            // Predicated region
            $region72: #{tpu_custom_call.1} parent=48 // pred_check
              _
            $region73: #{tpu_custom_call.1} parent=48 // pred_check_branch
              %422 = sbr.rel target = $region75
            $region74: #{tpu_custom_call.1} parent=48 // pred_region
              %423 = sst [smem:[#allocation10]] [#allocation21]
              %424 = sst [smem:[#allocation11]] [#allocation20]
            $region75: #{tpu_custom_call.1} parent=48 // pred_fallthru
              _
            %426 = shalt.err (0)
            %s428 = sshll.u32 %s418, 4
            %s429 = int_to_ptr.hbm [resolvable:$true] %s428
            %s430 = sshll.u32 %s420, 4
            %s431 = int_to_ptr.vmem [resolvable:$true] %s430
            %433 = dma.hbm_to_vmem [thread:$0]  %s429, 16, %s431, %s290
            %s434 = sadd.s32 %s276, 6
            %s435 = sadd.s32 %s269, %s434
            %s436 = sshra.s32 %s435, 7
            %s437 = sand.u32 %s435, 127
            %s438 = sadd.s32 %s436, %s33
            %s439 = smul.u32 %s438, 128
            %s440 = sshra.s32 %s435, 7
            %s441 = sand.u32 %s435, 127
            %s442 = sadd.s32 %s439, %s441
            %s443 = sld [smem:[#allocation5 + %s442]]
            %s444 = scalar_lea.hbm %s6, %s443
            %s445 = sadd.s32 %s434, %s287
            %s446 = scalar_lea.vmem [#allocation2], %s445
            // Predicated region
            $region76: #{tpu_custom_call.1} parent=48 // pred_check
              _
            $region77: #{tpu_custom_call.1} parent=48 // pred_check_branch
              %448 = sbr.rel target = $region79
            $region78: #{tpu_custom_call.1} parent=48 // pred_region
              %449 = sst [smem:[#allocation10]] [#allocation23]
              %450 = sst [smem:[#allocation11]] [#allocation22]
            $region79: #{tpu_custom_call.1} parent=48 // pred_fallthru
              _
            %452 = shalt.err (0)
            %s454 = sshll.u32 %s444, 4
            %s455 = int_to_ptr.hbm [resolvable:$true] %s454
            %s456 = sshll.u32 %s446, 4
            %s457 = int_to_ptr.vmem [resolvable:$true] %s456
            %459 = dma.hbm_to_vmem [thread:$0]  %s455, 16, %s457, %s290
            %s460 = sadd.s32 %s276, 7
            %s461 = sadd.s32 %s269, %s460
            %s462 = sshra.s32 %s461, 7
            %s463 = sand.u32 %s461, 127
            %s464 = sadd.s32 %s462, %s33
            %s465 = smul.u32 %s464, 128
            %s466 = sshra.s32 %s461, 7
            %s467 = sand.u32 %s461, 127
            %s468 = sadd.s32 %s465, %s467
            %s469 = sld [smem:[#allocation5 + %s468]]
            %s470 = scalar_lea.hbm %s6, %s469
            %s471 = sadd.s32 %s460, %s287
            %s472 = scalar_lea.vmem [#allocation2], %s471
            // Predicated region
            $region80: #{tpu_custom_call.1} parent=48 // pred_check
              _
            $region81: #{tpu_custom_call.1} parent=48 // pred_check_branch
              %474 = sbr.rel target = $region83
            $region82: #{tpu_custom_call.1} parent=48 // pred_region
              %475 = sst [smem:[#allocation10]] [#allocation25]
              %476 = sst [smem:[#allocation11]] [#allocation24]
            $region83: #{tpu_custom_call.1} parent=48 // pred_fallthru
              _
            %478 = shalt.err (0)
            %s480 = sshll.u32 %s470, 4
            %s481 = int_to_ptr.hbm [resolvable:$true] %s480
            %s482 = sshll.u32 %s472, 4
            %s483 = int_to_ptr.vmem [resolvable:$true] %s482
            %485 = dma.hbm_to_vmem [thread:$0]  %s481, 16, %s483, %s290
          $region49: #{tpu_custom_call.1} parent=43 // loop_footer
            %s275 = sadd.s32 1, %s271
          $region50: #{tpu_custom_call.1} parent=43 // loop_footer_branch
            %270 = sbr.rel target = $region46
          $region51: #{tpu_custom_call.1} parent=43 // loop_exit
            _
        $region44: #{tpu_custom_call.1} parent=39 // pred_fallthru
          _
        %s486 = sadd.s32 %s258, 1
        %p487 = scmp.lt.s32.totalorder %s486, 2
        // Predicated region
        $region84: #{tpu_custom_call.1} parent=39 // pred_check
          %p488 = pneg %p487
        $region85: #{tpu_custom_call.1} parent=39 // pred_check_branch
          %490 = sbr.rel (%p488) target = $region87
        $region86: #{tpu_custom_call.1} parent=39 // pred_region
          %s491 = sadd.s32 %s34, 1
          %p492 = scmp.eq.s32.totalorder %s491, 1
          %s493 = sadd.s32 %s33, 1
          %s494 = scalar_select %p492, %s493, %s33
          %s495 = scalar_select %p492, 0, %s491
          %s496 = ssub.s32 1, %s264
          %s497 = smul.u32 %s495, 16
          loop: start=0, step=1, limit=2
          $region88: #{tpu_custom_call.1} parent=86 // loop_pre_header
            _
          $region89: #{tpu_custom_call.1} parent=86 // loop_header
            %s499 = sphi 0, %s503
            %p500 = scmp.ge.s32.totalorder %s499, 2
          $region90: #{tpu_custom_call.1} parent=86 // loop_header_branch
            %502 = sbr.rel (%p500) target = $region94
          $region91: #{tpu_custom_call.1} parent=86 // loop_body
            %s504 = smul.u32 %s499, 8
            %s505 = sadd.s32 %s497, %s504
            %s506 = sshra.s32 %s505, 7
            %s507 = sand.u32 %s505, 127
            %s508 = sadd.s32 %s506, %s494
            %s509 = smul.u32 %s508, 128
            %s510 = sshra.s32 %s505, 7
            %s511 = sand.u32 %s505, 127
            %s512 = sadd.s32 %s509, %s511
            %s513 = sld [smem:[#allocation5 + %s512]]
            %s514 = scalar_lea.hbm %s6, %s513
            %s515 = smul.u32 %s496, 16
            %s516 = sadd.s32 %s504, %s515
            %s517 = scalar_lea.vmem [#allocation2], %s516
            %s518 = scalar_lea.sflag [#allocation3], %s496
            // Predicated region
            $region95: #{tpu_custom_call.1} parent=91 // pred_check
              _
            $region96: #{tpu_custom_call.1} parent=91 // pred_check_branch
              %520 = sbr.rel target = $region98
            $region97: #{tpu_custom_call.1} parent=91 // pred_region
              %521 = sst [smem:[#allocation10]] [#allocation27]
              %522 = sst [smem:[#allocation11]] [#allocation26]
            $region98: #{tpu_custom_call.1} parent=91 // pred_fallthru
              _
            %524 = shalt.err (0)
            %s526 = sshll.u32 %s514, 4
            %s527 = int_to_ptr.hbm [resolvable:$true] %s526
            %s528 = sshll.u32 %s517, 4
            %s529 = int_to_ptr.vmem [resolvable:$true] %s528
            %531 = dma.hbm_to_vmem [thread:$0]  %s527, 16, %s529, %s518
            %s532 = sadd.s32 %s504, 1
            %s533 = sadd.s32 %s497, %s532
            %s534 = sshra.s32 %s533, 7
            %s535 = sand.u32 %s533, 127
            %s536 = sadd.s32 %s534, %s494
            %s537 = smul.u32 %s536, 128
            %s538 = sshra.s32 %s533, 7
            %s539 = sand.u32 %s533, 127
            %s540 = sadd.s32 %s537, %s539
            %s541 = sld [smem:[#allocation5 + %s540]]
            %s542 = scalar_lea.hbm %s6, %s541
            %s543 = sadd.s32 %s532, %s515
            %s544 = scalar_lea.vmem [#allocation2], %s543
            // Predicated region
            $region99: #{tpu_custom_call.1} parent=91 // pred_check
              _
            $region100: #{tpu_custom_call.1} parent=91 // pred_check_branch
              %546 = sbr.rel target = $region102
            $region101: #{tpu_custom_call.1} parent=91 // pred_region
              %547 = sst [smem:[#allocation10]] [#allocation29]
              %548 = sst [smem:[#allocation11]] [#allocation28]
            $region102: #{tpu_custom_call.1} parent=91 // pred_fallthru
              _
            %550 = shalt.err (0)
            %s552 = sshll.u32 %s542, 4
            %s553 = int_to_ptr.hbm [resolvable:$true] %s552
            %s554 = sshll.u32 %s544, 4
            %s555 = int_to_ptr.vmem [resolvable:$true] %s554
            %557 = dma.hbm_to_vmem [thread:$0]  %s553, 16, %s555, %s518
            %s558 = sadd.s32 %s504, 2
            %s559 = sadd.s32 %s497, %s558
            %s560 = sshra.s32 %s559, 7
            %s561 = sand.u32 %s559, 127
            %s562 = sadd.s32 %s560, %s494
            %s563 = smul.u32 %s562, 128
            %s564 = sshra.s32 %s559, 7
            %s565 = sand.u32 %s559, 127
            %s566 = sadd.s32 %s563, %s565
            %s567 = sld [smem:[#allocation5 + %s566]]
            %s568 = scalar_lea.hbm %s6, %s567
            %s569 = sadd.s32 %s558, %s515
            %s570 = scalar_lea.vmem [#allocation2], %s569
            // Predicated region
            $region103: #{tpu_custom_call.1} parent=91 // pred_check
              _
            $region104: #{tpu_custom_call.1} parent=91 // pred_check_branch
              %572 = sbr.rel target = $region106
            $region105: #{tpu_custom_call.1} parent=91 // pred_region
              %573 = sst [smem:[#allocation10]] [#allocation31]
              %574 = sst [smem:[#allocation11]] [#allocation30]
            $region106: #{tpu_custom_call.1} parent=91 // pred_fallthru
              _
            %576 = shalt.err (0)
            %s578 = sshll.u32 %s568, 4
            %s579 = int_to_ptr.hbm [resolvable:$true] %s578
            %s580 = sshll.u32 %s570, 4
            %s581 = int_to_ptr.vmem [resolvable:$true] %s580
            %583 = dma.hbm_to_vmem [thread:$0]  %s579, 16, %s581, %s518
            %s584 = sadd.s32 %s504, 3
            %s585 = sadd.s32 %s497, %s584
            %s586 = sshra.s32 %s585, 7
            %s587 = sand.u32 %s585, 127
            %s588 = sadd.s32 %s586, %s494
            %s589 = smul.u32 %s588, 128
            %s590 = sshra.s32 %s585, 7
            %s591 = sand.u32 %s585, 127
            %s592 = sadd.s32 %s589, %s591
            %s593 = sld [smem:[#allocation5 + %s592]]
            %s594 = scalar_lea.hbm %s6, %s593
            %s595 = sadd.s32 %s584, %s515
            %s596 = scalar_lea.vmem [#allocation2], %s595
            // Predicated region
            $region107: #{tpu_custom_call.1} parent=91 // pred_check
              _
            $region108: #{tpu_custom_call.1} parent=91 // pred_check_branch
              %598 = sbr.rel target = $region110
            $region109: #{tpu_custom_call.1} parent=91 // pred_region
              %599 = sst [smem:[#allocation10]] [#allocation33]
              %600 = sst [smem:[#allocation11]] [#allocation32]
            $region110: #{tpu_custom_call.1} parent=91 // pred_fallthru
              _
            %602 = shalt.err (0)
            %s604 = sshll.u32 %s594, 4
            %s605 = int_to_ptr.hbm [resolvable:$true] %s604
            %s606 = sshll.u32 %s596, 4
            %s607 = int_to_ptr.vmem [resolvable:$true] %s606
            %609 = dma.hbm_to_vmem [thread:$0]  %s605, 16, %s607, %s518
            %s610 = sadd.s32 %s504, 4
            %s611 = sadd.s32 %s497, %s610
            %s612 = sshra.s32 %s611, 7
            %s613 = sand.u32 %s611, 127
            %s614 = sadd.s32 %s612, %s494
            %s615 = smul.u32 %s614, 128
            %s616 = sshra.s32 %s611, 7
            %s617 = sand.u32 %s611, 127
            %s618 = sadd.s32 %s615, %s617
            %s619 = sld [smem:[#allocation5 + %s618]]
            %s620 = scalar_lea.hbm %s6, %s619
            %s621 = sadd.s32 %s610, %s515
            %s622 = scalar_lea.vmem [#allocation2], %s621
            // Predicated region
            $region111: #{tpu_custom_call.1} parent=91 // pred_check
              _
            $region112: #{tpu_custom_call.1} parent=91 // pred_check_branch
              %624 = sbr.rel target = $region114
            $region113: #{tpu_custom_call.1} parent=91 // pred_region
              %625 = sst [smem:[#allocation10]] [#allocation35]
              %626 = sst [smem:[#allocation11]] [#allocation34]
            $region114: #{tpu_custom_call.1} parent=91 // pred_fallthru
              _
            %628 = shalt.err (0)
            %s630 = sshll.u32 %s620, 4
            %s631 = int_to_ptr.hbm [resolvable:$true] %s630
            %s632 = sshll.u32 %s622, 4
            %s633 = int_to_ptr.vmem [resolvable:$true] %s632
            %635 = dma.hbm_to_vmem [thread:$0]  %s631, 16, %s633, %s518
            %s636 = sadd.s32 %s504, 5
            %s637 = sadd.s32 %s497, %s636
            %s638 = sshra.s32 %s637, 7
            %s639 = sand.u32 %s637, 127
            %s640 = sadd.s32 %s638, %s494
            %s641 = smul.u32 %s640, 128
            %s642 = sshra.s32 %s637, 7
            %s643 = sand.u32 %s637, 127
            %s644 = sadd.s32 %s641, %s643
            %s645 = sld [smem:[#allocation5 + %s644]]
            %s646 = scalar_lea.hbm %s6, %s645
            %s647 = sadd.s32 %s636, %s515
            %s648 = scalar_lea.vmem [#allocation2], %s647
            // Predicated region
            $region115: #{tpu_custom_call.1} parent=91 // pred_check
              _
            $region116: #{tpu_custom_call.1} parent=91 // pred_check_branch
              %650 = sbr.rel target = $region118
            $region117: #{tpu_custom_call.1} parent=91 // pred_region
              %651 = sst [smem:[#allocation10]] [#allocation37]
              %652 = sst [smem:[#allocation11]] [#allocation36]
            $region118: #{tpu_custom_call.1} parent=91 // pred_fallthru
              _
            %654 = shalt.err (0)
            %s656 = sshll.u32 %s646, 4
            %s657 = int_to_ptr.hbm [resolvable:$true] %s656
            %s658 = sshll.u32 %s648, 4
            %s659 = int_to_ptr.vmem [resolvable:$true] %s658
            %661 = dma.hbm_to_vmem [thread:$0]  %s657, 16, %s659, %s518
            %s662 = sadd.s32 %s504, 6
            %s663 = sadd.s32 %s497, %s662
            %s664 = sshra.s32 %s663, 7
            %s665 = sand.u32 %s663, 127
            %s666 = sadd.s32 %s664, %s494
            %s667 = smul.u32 %s666, 128
            %s668 = sshra.s32 %s663, 7
            %s669 = sand.u32 %s663, 127
            %s670 = sadd.s32 %s667, %s669
            %s671 = sld [smem:[#allocation5 + %s670]]
            %s672 = scalar_lea.hbm %s6, %s671
            %s673 = sadd.s32 %s662, %s515
            %s674 = scalar_lea.vmem [#allocation2], %s673
            // Predicated region
            $region119: #{tpu_custom_call.1} parent=91 // pred_check
              _
            $region120: #{tpu_custom_call.1} parent=91 // pred_check_branch
              %676 = sbr.rel target = $region122
            $region121: #{tpu_custom_call.1} parent=91 // pred_region
              %677 = sst [smem:[#allocation10]] [#allocation39]
              %678 = sst [smem:[#allocation11]] [#allocation38]
            $region122: #{tpu_custom_call.1} parent=91 // pred_fallthru
              _
            %680 = shalt.err (0)
            %s682 = sshll.u32 %s672, 4
            %s683 = int_to_ptr.hbm [resolvable:$true] %s682
            %s684 = sshll.u32 %s674, 4
            %s685 = int_to_ptr.vmem [resolvable:$true] %s684
            %687 = dma.hbm_to_vmem [thread:$0]  %s683, 16, %s685, %s518
            %s688 = sadd.s32 %s504, 7
            %s689 = sadd.s32 %s497, %s688
            %s690 = sshra.s32 %s689, 7
            %s691 = sand.u32 %s689, 127
            %s692 = sadd.s32 %s690, %s494
            %s693 = smul.u32 %s692, 128
            %s694 = sshra.s32 %s689, 7
            %s695 = sand.u32 %s689, 127
            %s696 = sadd.s32 %s693, %s695
            %s697 = sld [smem:[#allocation5 + %s696]]
            %s698 = scalar_lea.hbm %s6, %s697
            %s699 = sadd.s32 %s688, %s515
            %s700 = scalar_lea.vmem [#allocation2], %s699
            // Predicated region
            $region123: #{tpu_custom_call.1} parent=91 // pred_check
              _
            $region124: #{tpu_custom_call.1} parent=91 // pred_check_branch
              %702 = sbr.rel target = $region126
            $region125: #{tpu_custom_call.1} parent=91 // pred_region
              %703 = sst [smem:[#allocation10]] [#allocation41]
              %704 = sst [smem:[#allocation11]] [#allocation40]
            $region126: #{tpu_custom_call.1} parent=91 // pred_fallthru
              _
            %706 = shalt.err (0)
            %s708 = sshll.u32 %s698, 4
            %s709 = int_to_ptr.hbm [resolvable:$true] %s708
            %s710 = sshll.u32 %s700, 4
            %s711 = int_to_ptr.vmem [resolvable:$true] %s710
            %713 = dma.hbm_to_vmem [thread:$0]  %s709, 16, %s711, %s518
          $region92: #{tpu_custom_call.1} parent=86 // loop_footer
            %s503 = sadd.s32 1, %s499
          $region93: #{tpu_custom_call.1} parent=86 // loop_footer_branch
            %498 = sbr.rel target = $region89
          $region94: #{tpu_custom_call.1} parent=86 // loop_exit
            _
        $region87: #{tpu_custom_call.1} parent=39 // pred_fallthru
          _
        %s714 = smul.u32 %s34, 16
        %s715 = scalar_lea.vmem %s2, %s714
        %v716 = vld [vmem:[%s715] sm:$0xff]
        %v717 = vld [vmem:[%s715 + $0x8] sm:$0xff]
        %v718 = vld [vmem:[%s3] sm:$0x1]
        %v719 = vld [vmem:[%s3 + $0x1] sm:$0x1]
        %v720 = vsub.f32 %v719, %v718
        %v721 = vperm.slane %v718, 0
        %v722 = vadd.f32 %v716, %v721
        %v723 = vadd.f32 %v717, %v721
        %v724 = vld [vmem:[%s253] sm:$0xff]
        %v725 = vld [vmem:[%s253 + $0x8] sm:$0xff]
        %727 = vset.pattern.permute.xlu0 0
        %728 = vperm.xlu0 %727, %v724
        %v729 = vpop.permute.xlu0 %728
        %732 = vset.pattern.permute.xlu0 0
        %733 = vperm.xlu0 %732, %v725
        %v734 = vpop.permute.xlu0 %733
        %v736 = vperm.slane %v720, 0
        %v737 = vmul.f32 %v729, %v736
        %v738 = vmul.f32 %v734, %v736
        %v739 = vadd.f32 %v722, %v737
        %v740 = vadd.f32 %v723, %v738
        %s741 = smul.u32 %s264, 16
        %s742 = scalar_lea.vmem [#allocation2], %s741
        %s743 = scalar_lea.sflag [#allocation3], %s264
        %s744 = smul.u32 16, 1
        %s745 = sshll.u32 %s744, 4
        %746 = dma.done %s743, %s745
        %v747 = vld [vmem:[%s742] sm:$0xff]
        %v748 = vld [vmem:[%s742 + $0x8] sm:$0xff]
        %v749 = vadd.f32 %v747, %v739
        %v750 = vadd.f32 %v748, %v740
        %751 = vadd.xlane.f32.xlu0 %v749
        %v752 = vpop.xlane.xlu0 %751
        %753 = vadd.xlane.f32.xlu0 %v750
        %v754 = vpop.xlane.xlu0 %753
        %v755 = vrcp.pop 128.0
        %v756 = vmul.f32 128.0, %v755
        %v757 = vsub.f32 1.0, %v756
        %v758 = vmul.f32 %v755, %v757
        %v759 = vadd.f32 %v755, %v758
        %vm760 = vweird.f32 %v755
        %v761 = vsel %vm760, %v755, %v759
        %v762 = vmul.f32 %v752, %v761
        %v763 = vmul.f32 %v754, %v761
        %v764 = vsub.f32 %v749, %v762
        %v765 = vsub.f32 %v750, %v763
        %v766 = vmul.f32 %v764, %v764
        %v767 = vmul.f32 %v765, %v765
        %768 = vadd.xlane.f32.xlu0 %v766
        %v769 = vpop.xlane.xlu0 %768
        %770 = vadd.xlane.f32.xlu0 %v767
        %v771 = vpop.xlane.xlu0 %770
        %v772 = vmul.f32 %v769, %v761
        %v773 = vmul.f32 %v771, %v761
        %v774 = vadd.f32 %v772, 1e-05
        %v775 = vadd.f32 %v773, 1e-05
        %v776 = vrsqrt.pop %v774
        %v777 = vmul.f32 %v776, %v774
        %v778 = vmul.f32 %v777, %v776
        %v779 = vmul.f32 0.5, %v778
        %v780 = vsub.f32 1.5, %v779
        %v781 = vmul.f32 %v776, %v780
        %vm782 = vweird.f32 %v774
        %vm783 = vweird.f32 %v776
        %vm784 = vmor %vm782, %vm783
        %v785 = vsel %vm784, %v776, %v781
        %v786 = vrsqrt.pop %v775
        %v787 = vmul.f32 %v786, %v775
        %v788 = vmul.f32 %v787, %v786
        %v789 = vmul.f32 0.5, %v788
        %v790 = vsub.f32 1.5, %v789
        %v791 = vmul.f32 %v786, %v790
        %vm792 = vweird.f32 %v775
        %vm793 = vweird.f32 %v786
        %vm794 = vmor %vm792, %vm793
        %v795 = vsel %vm794, %v786, %v791
        %v796 = vmul.f32 %v764, %v785
        %v797 = vmul.f32 %v765, %v795
        %v798 = vld [vmem:[%s4] sm:$0x1]
        %v800 = vperm.slane %v798, 0
        %v802 = vmul.f32 %v796, %v800
        %v803 = vmul.f32 %v797, %v800
        %v804 = vld [vmem:[%s5] sm:$0x1]
        %v806 = vperm.slane %v804, 0
        %v808 = vadd.f32 %v802, %v806
        %v809 = vadd.f32 %v803, %v806
        %810 = vst [vmem:[%s247] sm:$0xff] %v808
        %811 = vst [vmem:[%s247 + $0x8] sm:$0xff] %v809
        %s812 = sand.u32 %s163, 1
        %s813 = scalar_lea.sflag [#allocation7], %s812
        %s814 = sand.u32 %s163, 1
        %s815 = smul.addr %s814, 16
        %s816 = scalar_lea.vmem [#allocation6], %s815
        // Predicated region
        $region127: #{tpu_custom_call.1} parent=39 // pred_check
          %p817 = pneg %p173
        $region128: #{tpu_custom_call.1} parent=39 // pred_check_branch
          %819 = sbr.rel (%p817) target = $region130
        $region129: #{tpu_custom_call.1} parent=39 // pred_region
          %s820 = sadd.s32 %s33, %s34
          %s821 = smul.u32 2, %s820
          %823 = vsyncadd %s813, 0
          %s824 = smul.addr %s821, 8
          %s825 = scalar_lea.hbm %s7, %s824
          %s826 = sshll.u32 %s816, 4
          %s827 = int_to_ptr.vmem [resolvable:$true] %s826
          %s828 = sshll.u32 %s825, 4
          %s829 = int_to_ptr.hbm [resolvable:$true] %s828
          %834 = dma.vmem_to_hbm [thread:$0]  %s827, 256, %s829, %s813, 128, 128, 8
        $region130: #{tpu_custom_call.1} parent=39 // pred_fallthru
          _
      $region40: #{tpu_custom_call.1} parent=5 // pred_fallthru
        _
      %p835 = scmp.le.s32.totalorder 2, %s24
      // Predicated region
      $region131: #{tpu_custom_call.1} parent=5 // pred_check
        %p836 = pneg %p835
      $region132: #{tpu_custom_call.1} parent=5 // pred_check_branch
        %838 = sbr.rel (%p836) target = $region134
      $region133: #{tpu_custom_call.1} parent=5 // pred_region
        %s839 = ssub.s32 %s24, 2
        // Predicated region
        $region135: #{tpu_custom_call.1} parent=133 // pred_check
          %p840 = pneg %p179
        $region136: #{tpu_custom_call.1} parent=133 // pred_check_branch
          %842 = sbr.rel (%p840) target = $region138
        $region137: #{tpu_custom_call.1} parent=133 // pred_region
          %s843 = sand.u32 %s164, 1
          %s844 = scalar_lea.sflag [#allocation7], %s843
          %s845 = sand.u32 %s164, 1
          %s846 = smul.addr %s845, 16
          %s847 = scalar_lea.vmem [#allocation6], %s846
          %849 = dma.done %s844, 256
        $region138: #{tpu_custom_call.1} parent=133 // pred_fallthru
          _
      $region134: #{tpu_custom_call.1} parent=5 // pred_fallthru
        _
    $region6: #{tpu_custom_call.1} parent=1 // loop_footer
      %s28 = sadd.s32 1, %s24
    $region7: #{tpu_custom_call.1} parent=1 // loop_footer_branch
      %23 = sbr.rel target = $region3
    $region8: #{tpu_custom_call.1} parent=1 // loop_exit
      _
    %850 = vsyncpa [#allocation7], 1
    %s851 = scalar_lea.sflag [#allocation7], 1
    %852 = vsyncpa %s851, 1
  %853 = vsyncmov [#allocation3]
  %s854 = vpop.sfrf %853
  %p855 = scmp.eq.s32.totalorder %s854, 0
  %p856 = pneg %p855
  %858 = shalt.err (%p856)
  %s859 = scalar_lea.sflag [#allocation3], 1
  %860 = vsyncmov %s859
  %s861 = vpop.sfrf %860
  %p862 = scmp.eq.s32.totalorder %s861, 0
  %p863 = pneg %p862
  %865 = shalt.err (%p863)

</llo_original>
